<compile_context>
chip_gen: v6e
topology: v6e:2x2x1
jax: 0.10.0
libtpu: 0.0.40
codegen_flags: <defaults>
</compile_context>

<pallas_src>
import jax
import jax.numpy as jnp
from jax.experimental import pallas as pl
from jax.experimental.pallas import tpu as pltpu


def make_kernel(H, W, Cout, cdtype):
    Wp = W + 2                 # padded width
    HWv = H * Wp               # conv-output rows (incl. 2 garbage cols / row)
    LEN = (H + 3) * Wp         # flattened padded image length
    SQRT1_2 = 0.7071067811865476
    EPS = 1e-5
    OFFS = tuple(dy * Wp + dx for dy in range(3) for dx in range(3))   # t = dy*3 + dx

    def conv3x3_im2col(xflat, w_ref, bias):
        # xflat: (Cp, LEN) f32, Cp multiple of 8 -> every concat piece is tile aligned.
        # One matmul with K = 9*Cp instead of nine K=Cp matmuls.
        taps = jnp.concatenate([xflat[:, off:off + HWv] for off in OFFS], axis=0)
        z = jnp.dot(w_ref[...], taps.astype(cdtype),
                    preferred_element_type=jnp.float32)            # (Cout, HWv) f32
        return z + bias

    def gn_gelu(z, mask, A, gamma, beta):
        zm = z * mask                                               # zero garbage columns
        s1 = jnp.sum(zm, axis=1, keepdims=True)                     # (Cout, 1) channel sum
        s2 = jnp.sum(zm * zm, axis=1, keepdims=True)                # (Cout, 1) channel sumsq
        m_g = jnp.dot(A, s1, preferred_element_type=jnp.float32)    # group mean per channel
        e2_g = jnp.dot(A, s2, preferred_element_type=jnp.float32)   # group E[x^2] per channel
        inv_std = jax.lax.rsqrt(e2_g - m_g * m_g + EPS)             # biased var (PyTorch)
        y = (z - m_g) * inv_std * gamma + beta
        y = 0.5 * y * (1.0 + jax.lax.erf(y * SQRT1_2))              # exact (erf) GELU
        # trailing mask keeps garbage columns exactly zero -> required for the conv2 re-pad
        return y * mask

    def kernel(x_ref, w1_ref, w2_ref, p_ref, A_ref, mask_ref, out_ref):
        mask = mask_ref[...]                       # (1, HWv) valid-column mask
        A = A_ref[...]                             # (Cout, Cout) group-averaging matrix
        p = p_ref[...]                             # (Cout, 6) = [b1, g1, be1, b2, g2, be2]
        x = x_ref[0]                               # (Cin_p, LEN) f32

        # --- GELUConvBlock 1 ---
        z1 = conv3x3_im2col(x, w1_ref, p[:, 0:1])
        x1 = gn_gelu(z1, mask, A, p[:, 1:2], p[:, 2:3])             # (Cout, HWv) f32

        # re-pad x1 onto the padded flat grid for conv2: padded pos = r + Wp + 1,
        # halos are zero because x1's garbage columns are already zero.
        x1p = jnp.concatenate(
            [jnp.zeros((Cout, Wp + 1), jnp.float32),
             x1,
             jnp.zeros((Cout, LEN - HWv - Wp - 1), jnp.float32)], axis=1)   # (Cout, LEN)

        # --- GELUConvBlock 2 ---
        z2 = conv3x3_im2col(x1p, w2_ref, p[:, 3:4])
        x2 = gn_gelu(z2, mask, A, p[:, 4:5], p[:, 5:6])

        # residual add (x1 is only ~3 vregs here -> no long-live-range spill risk)
        out_ref[0] = x1 + x2

    return kernel


def residual_conv_block(x_nchw, w1, b1, g1, be1, w2, b2, g2, be2, num_groups,
                        matmul_dtype=jnp.bfloat16):
    N, Cin, H, W = x_nchw.shape
    Cout = w1.shape[0]
    if Cout % 8 != 0:
        raise NotImplementedError("Cout must be a multiple of 8 for tile-aligned im2col")
    Wp = W + 2
    HWv = H * Wp
    LEN = (H + 3) * Wp
    Cin_p = ((Cin + 7) // 8) * 8
    cdtype = jnp.dtype(matmul_dtype)

    # NCHW -> zero-pad channels to Cin_p, spatial rows (1,2) / cols (1,1), flatten spatial.
    xpad = jnp.pad(x_nchw.astype(jnp.float32),
                   ((0, 0), (0, Cin_p - Cin), (1, 2), (1, 1))).reshape(N, Cin_p, LEN)

    def im2col_weights(w, in_pad):   # (O, I, 3, 3) -> (O, 9*(I+in_pad)), tap-major / ch-minor
        wpd = jnp.pad(w, ((0, 0), (0, in_pad), (0, 0), (0, 0)))
        O, Ip = wpd.shape[0], wpd.shape[1]
        return jnp.transpose(wpd, (0, 2, 3, 1)).reshape(O, 9 * Ip).astype(cdtype)

    w1f = im2col_weights(w1, Cin_p - Cin)          # (Cout, 9*Cin_p)
    w2f = im2col_weights(w2, 0)                    # (Cout, 9*Cout)
    params = jnp.stack([b1, g1, be1, b2, g2, be2], axis=1).astype(jnp.float32)   # (Cout, 6)

    # group-averaging matrix (includes 1/(group_size*H*W)): channel sums -> group mean
    cg = Cout // num_groups
    gidx = jnp.arange(Cout) // cg
    A = (gidx[:, None] == gidx[None, :]).astype(jnp.float32) / float(cg * H * W)

    # valid-column mask over the flattened conv-output grid, lane-major (1, HWv)
    mask = ((jnp.arange(HWv) % Wp) < W).astype(jnp.float32).reshape(1, HWv)

    kernel = make_kernel(H, W, Cout, cdtype)

    # explicit VMEM budget: 2x (double-buffered) blocks + in-kernel intermediates + slack
    cs = cdtype.itemsize
    blk = (Cin_p * LEN * 4 + Cout * 9 * Cin_p * cs + Cout * 9 * Cout * cs
           + 2 * Cout * 128 * 4            # params + A (lane padded)
           + 8 * HWv * 4                   # mask (sublane padded)
           + Cout * HWv * 4)               # output block
    interm = 9 * (Cin_p + Cout) * HWv * (4 + cs) + 12 * Cout * LEN * 4
    vmem_limit = int(min(100 << 20, max(16 << 20, 2 * blk + interm + (4 << 20))))

    out = pl.pallas_call(
        kernel,
        out_shape=jax.ShapeDtypeStruct((N, Cout, HWv), jnp.float32),
        grid_spec=pltpu.PrefetchScalarGridSpec(
            num_scalar_prefetch=0,
            grid=(N,),
            in_specs=[
                pl.BlockSpec((1, Cin_p, LEN), lambda n: (n, 0, 0)),
                pl.BlockSpec((Cout, 9 * Cin_p), lambda n: (0, 0)),
                pl.BlockSpec((Cout, 9 * Cout), lambda n: (0, 0)),
                pl.BlockSpec((Cout, 6), lambda n: (0, 0)),
                pl.BlockSpec((Cout, Cout), lambda n: (0, 0)),
                pl.BlockSpec((1, HWv), lambda n: (0, 0)),
            ],
            out_specs=pl.BlockSpec((1, Cout, HWv), lambda n: (n, 0, 0)),
        ),
        compiler_params=pltpu.CompilerParams(
            dimension_semantics=("parallel",),       # batch sharded across TCs (v7x megacore)
            vmem_limit_bytes=vmem_limit,
        ),
    )(xpad, w1f, w2f, params, A, mask)

    # (N, Cout, HWv) -> NCHW: drop the two garbage columns of each row (no transpose needed)
    return out.reshape(N, Cout, H, Wp)[:, :, :, :W]


# ---------------- pure-JAX reference (mirrors the PyTorch module, full f32) ----------------
def ref_gelu_conv_block(x, w, b, gamma, beta, groups):
    y = jax.lax.conv_general_dilated(
        x, w, window_strides=(1, 1), padding=((1, 1), (1, 1)),
        dimension_numbers=("NCHW", "OIHW", "NCHW"),
        precision=jax.lax.Precision.HIGHEST)
    y = y + b[None, :, None, None]
    N, C, H, W = y.shape
    yg = y.reshape(N, groups, (C // groups) * H * W)
    m = jnp.mean(yg, axis=2, keepdims=True)
    v = jnp.mean((yg - m) ** 2, axis=2, keepdims=True)
    yn = ((yg - m) / jnp.sqrt(v + 1e-5)).reshape(N, C, H, W)
    yn = yn * gamma[None, :, None, None] + beta[None, :, None, None]
    return 0.5 * yn * (1.0 + jax.lax.erf(yn / jnp.sqrt(2.0)))


def ref_residual_conv_block(x, w1, b1, g1, be1, w2, b2, g2, be2, groups):
    x1 = ref_gelu_conv_block(x, w1, b1, g1, be1, groups)
    x2 = ref_gelu_conv_block(x1, w2, b2, g2, be2, groups)
    return x1 + x2


if __name__ == "__main__":
    N, Cin, Cout, H, W, G = 2, 4, 8, 16, 16, 2     # GroupNorm(2, 8)
    key = jax.random.PRNGKey(0)
    ks = jax.random.split(key, 9)
    x = jax.random.normal(ks[0], (N, Cin, H, W), jnp.float32)
    w1 = 0.1 * jax.random.normal(ks[1], (Cout, Cin, 3, 3), jnp.float32)
    b1 = 0.1 * jax.random.normal(ks[2], (Cout,), jnp.float32)
    g1 = 1.0 + 0.1 * jax.random.normal(ks[3], (Cout,), jnp.float32)
    be1 = 0.1 * jax.random.normal(ks[4], (Cout,), jnp.float32)
    w2 = 0.1 * jax.random.normal(ks[5], (Cout, Cout, 3, 3), jnp.float32)
    b2 = 0.1 * jax.random.normal(ks[6], (Cout,), jnp.float32)
    g2 = 1.0 + 0.1 * jax.random.normal(ks[7], (Cout,), jnp.float32)
    be2 = 0.1 * jax.random.normal(ks[8], (Cout,), jnp.float32)

    ref = ref_residual_conv_block(x, w1, b1, g1, be1, w2, b2, g2, be2, G)

    # 1) performance config: bf16 MXU operands, f32 accumulate / GroupNorm / GELU.
    out_bf16 = residual_conv_block(x, w1, b1, g1, be1, w2, b2, g2, be2, G,
                                   matmul_dtype=jnp.bfloat16)
    out_bf16 = jax.block_until_ready(out_bf16)
    assert out_bf16.shape == (N, Cout, H, W)
    err_bf16 = float(jnp.max(jnp.abs(out_bf16 - ref)))
    if err_bf16 > 7e-2:      # budget for bf16 operand rounding (accumulation stays f32)
        raise AssertionError(f"bf16-operand kernel mismatch vs reference: max abs err {err_bf16}")

    # 2) full-f32 operands: tight check of the conv geometry / GroupNorm / GELU math.
    out_f32 = residual_conv_block(x, w1, b1, g1, be1, w2, b2, g2, be2, G,
                                  matmul_dtype=jnp.float32)
    out_f32 = jax.block_until_ready(out_f32)
    assert out_f32.shape == (N, Cout, H, W)
    err_f32 = float(jnp.max(jnp.abs(out_f32 - ref)))
    if err_f32 > 5e-3:
        raise AssertionError(f"f32 kernel mismatch vs reference: max abs err {err_f32}")

    print("KERNEL_OK")
</pallas_src>

<mosaic_0001>
module attributes {stable_mosaic.version = 11 : i64} {
  func.func @kernel(%arg0: i32, %arg1: memref<1x8x342xf32, #tpu.memory_space<vmem>>, %arg2: memref<8x72xbf16, #tpu.memory_space<vmem>>, %arg3: memref<8x72xbf16, #tpu.memory_space<vmem>>, %arg4: memref<8x6xf32, #tpu.memory_space<vmem>>, %arg5: memref<8x8xf32, #tpu.memory_space<vmem>>, %arg6: memref<1x288xf32, #tpu.memory_space<vmem>>, %arg7: memref<1x8x288xf32, #tpu.memory_space<vmem>>) attributes {dimension_semantics = [#tpu.dimension_semantics<parallel>], iteration_bounds = array<i64: 2>, scalar_prefetch = 0 : i64, scratch_operands = 0 : i64, tpu.core_type = #tpu.core_type<tc>, window_params = [{transform_indices = @transform_0, window_bounds = array<i64: 1, 8, 342>}, {pipeline_mode = #tpu.pipeline_mode<synchronous>, transform_indices = @transform_1, window_bounds = array<i64: 8, 72>}, {pipeline_mode = #tpu.pipeline_mode<synchronous>, transform_indices = @transform_2, window_bounds = array<i64: 8, 72>}, {pipeline_mode = #tpu.pipeline_mode<synchronous>, transform_indices = @transform_3, window_bounds = array<i64: 8, 6>}, {pipeline_mode = #tpu.pipeline_mode<synchronous>, transform_indices = @transform_4, window_bounds = array<i64: 8, 8>}, {pipeline_mode = #tpu.pipeline_mode<synchronous>, transform_indices = @transform_5, window_bounds = array<i64: 1, 288>}, {transform_indices = @transform_6, window_bounds = array<i64: 1, 8, 288>}]} {
    %c0 = arith.constant 0 : index
    %c0_0 = arith.constant 0 : index
    %0 = vector.load %arg6[%c0, %c0_0] : memref<1x288xf32, #tpu.memory_space<vmem>>, vector<1x288xf32>
    %c0_1 = arith.constant 0 : index
    %c0_2 = arith.constant 0 : index
    %1 = vector.load %arg5[%c0_1, %c0_2] : memref<8x8xf32, #tpu.memory_space<vmem>>, vector<8x8xf32>
    %c0_3 = arith.constant 0 : index
    %c0_4 = arith.constant 0 : index
    %2 = vector.load %arg4[%c0_3, %c0_4] : memref<8x6xf32, #tpu.memory_space<vmem>>, vector<8x6xf32>
    %c0_5 = arith.constant 0 : index
    %c0_6 = arith.constant 0 : index
    %c0_7 = arith.constant 0 : index
    %3 = vector.load %arg1[%c0_5, %c0_6, %c0_7] : memref<1x8x342xf32, #tpu.memory_space<vmem>>, vector<1x8x342xf32>
    %4 = vector.shape_cast %3 : vector<1x8x342xf32> to vector<8x342xf32>
    %5 = vector.extract_strided_slice %2 {offsets = [0, 0], sizes = [8, 1], strides = [1, 1]} : vector<8x6xf32> to vector<8x1xf32>
    %6 = vector.extract_strided_slice %4 {offsets = [0, 0], sizes = [8, 288], strides = [1, 1]} : vector<8x342xf32> to vector<8x288xf32>
    %7 = vector.extract_strided_slice %4 {offsets = [0, 1], sizes = [8, 288], strides = [1, 1]} : vector<8x342xf32> to vector<8x288xf32>
    %8 = vector.extract_strided_slice %4 {offsets = [0, 2], sizes = [8, 288], strides = [1, 1]} : vector<8x342xf32> to vector<8x288xf32>
    %9 = vector.extract_strided_slice %4 {offsets = [0, 18], sizes = [8, 288], strides = [1, 1]} : vector<8x342xf32> to vector<8x288xf32>
    %10 = vector.extract_strided_slice %4 {offsets = [0, 19], sizes = [8, 288], strides = [1, 1]} : vector<8x342xf32> to vector<8x288xf32>
    %11 = vector.extract_strided_slice %4 {offsets = [0, 20], sizes = [8, 288], strides = [1, 1]} : vector<8x342xf32> to vector<8x288xf32>
    %12 = vector.extract_strided_slice %4 {offsets = [0, 36], sizes = [8, 288], strides = [1, 1]} : vector<8x342xf32> to vector<8x288xf32>
    %13 = vector.extract_strided_slice %4 {offsets = [0, 37], sizes = [8, 288], strides = [1, 1]} : vector<8x342xf32> to vector<8x288xf32>
    %14 = vector.extract_strided_slice %4 {offsets = [0, 38], sizes = [8, 288], strides = [1, 1]} : vector<8x342xf32> to vector<8x288xf32>
    %15 = tpu.concatenate %6, %7, %8, %9, %10, %11, %12, %13, %14 in 0 : vector<8x288xf32>, vector<8x288xf32>, vector<8x288xf32>, vector<8x288xf32>, vector<8x288xf32>, vector<8x288xf32>, vector<8x288xf32>, vector<8x288xf32>, vector<8x288xf32> -> vector<72x288xf32>
    %c0_8 = arith.constant 0 : index
    %c0_9 = arith.constant 0 : index
    %16 = vector.load %arg2[%c0_8, %c0_9] : memref<8x72xbf16, #tpu.memory_space<vmem>>, vector<8x72xbf16>
    %17 = arith.truncf %15 : vector<72x288xf32> to vector<72x288xbf16>
    %cst = arith.constant dense<0.000000e+00> : vector<8x288xf32>
    %18 = tpu.matmul %16, %17, %cst {dimension_numbers = #tpu.dot_dimension_numbers<[1], [0], [0], [1], [0, 0, 1, 1], [], []>} : vector<8x72xbf16>, vector<72x288xbf16>, vector<8x288xf32> -> vector<8x288xf32>
    %19 = vector.broadcast %5 : vector<8x1xf32> to vector<8x288xf32>
    %20 = arith.addf %18, %19 : vector<8x288xf32>
    %21 = vector.extract_strided_slice %2 {offsets = [0, 1], sizes = [8, 1], strides = [1, 1]} : vector<8x6xf32> to vector<8x1xf32>
    %22 = vector.extract_strided_slice %2 {offsets = [0, 2], sizes = [8, 1], strides = [1, 1]} : vector<8x6xf32> to vector<8x1xf32>
    %23 = vector.broadcast %0 : vector<1x288xf32> to vector<8x288xf32>
    %24 = arith.mulf %20, %23 : vector<8x288xf32>
    %cst_10 = arith.constant dense<0.000000e+00> : vector<8xf32>
    %25 = vector.multi_reduction <add>, %24, %cst_10 [1] : vector<8x288xf32> to vector<8xf32>
    %26 = vector.shape_cast %25 : vector<8xf32> to vector<8x1xf32>
    %27 = arith.mulf %24, %24 : vector<8x288xf32>
    %cst_11 = arith.constant dense<0.000000e+00> : vector<8xf32>
    %28 = vector.multi_reduction <add>, %27, %cst_11 [1] : vector<8x288xf32> to vector<8xf32>
    %29 = vector.shape_cast %28 : vector<8xf32> to vector<8x1xf32>
    %cst_12 = arith.constant dense<0.000000e+00> : vector<8x1xf32>
    %30 = tpu.matmul %1, %26, %cst_12 {dimension_numbers = #tpu.dot_dimension_numbers<[1], [0], [0], [1], [0, 0, 1, 1], [], []>} : vector<8x8xf32>, vector<8x1xf32>, vector<8x1xf32> -> vector<8x1xf32>
    %cst_13 = arith.constant dense<0.000000e+00> : vector<8x1xf32>
    %31 = tpu.matmul %1, %29, %cst_13 {dimension_numbers = #tpu.dot_dimension_numbers<[1], [0], [0], [1], [0, 0, 1, 1], [], []>} : vector<8x8xf32>, vector<8x1xf32>, vector<8x1xf32> -> vector<8x1xf32>
    %32 = arith.mulf %30, %30 : vector<8x1xf32>
    %33 = arith.subf %31, %32 : vector<8x1xf32>
    %cst_14 = arith.constant 9.99999974E-6 : f32
    %34 = vector.broadcast %cst_14 : f32 to vector<8x1xf32>
    %35 = arith.addf %33, %34 : vector<8x1xf32>
    %36 = math.rsqrt %35 : vector<8x1xf32>
    %37 = vector.broadcast %30 : vector<8x1xf32> to vector<8x288xf32>
    %38 = arith.subf %20, %37 : vector<8x288xf32>
    %39 = vector.broadcast %36 : vector<8x1xf32> to vector<8x288xf32>
    %40 = arith.mulf %38, %39 : vector<8x288xf32>
    %41 = vector.broadcast %21 : vector<8x1xf32> to vector<8x288xf32>
    %42 = arith.mulf %40, %41 : vector<8x288xf32>
    %43 = vector.broadcast %22 : vector<8x1xf32> to vector<8x288xf32>
    %44 = arith.addf %42, %43 : vector<8x288xf32>
    %cst_15 = arith.constant 5.000000e-01 : f32
    %45 = vector.broadcast %cst_15 : f32 to vector<8x288xf32>
    %46 = arith.mulf %45, %44 : vector<8x288xf32>
    %cst_16 = arith.constant 0.707106769 : f32
    %47 = vector.broadcast %cst_16 : f32 to vector<8x288xf32>
    %48 = arith.mulf %44, %47 : vector<8x288xf32>
    %49 = math.erf %48 : vector<8x288xf32>
    %cst_17 = arith.constant 1.000000e+00 : f32
    %50 = vector.broadcast %cst_17 : f32 to vector<8x288xf32>
    %51 = arith.addf %50, %49 : vector<8x288xf32>
    %52 = arith.mulf %46, %51 : vector<8x288xf32>
    %53 = vector.broadcast %0 : vector<1x288xf32> to vector<8x288xf32>
    %54 = arith.mulf %52, %53 : vector<8x288xf32>
    %cst_18 = arith.constant 0.000000e+00 : f32
    %55 = vector.broadcast %cst_18 : f32 to vector<8x19xf32>
    %cst_19 = arith.constant 0.000000e+00 : f32
    %56 = vector.broadcast %cst_19 : f32 to vector<8x35xf32>
    %57 = tpu.concatenate %55, %54, %56 in 1 : vector<8x19xf32>, vector<8x288xf32>, vector<8x35xf32> -> vector<8x342xf32>
    %58 = vector.extract_strided_slice %2 {offsets = [0, 3], sizes = [8, 1], strides = [1, 1]} : vector<8x6xf32> to vector<8x1xf32>
    %59 = vector.extract_strided_slice %57 {offsets = [0, 0], sizes = [8, 288], strides = [1, 1]} : vector<8x342xf32> to vector<8x288xf32>
    %60 = vector.extract_strided_slice %57 {offsets = [0, 1], sizes = [8, 288], strides = [1, 1]} : vector<8x342xf32> to vector<8x288xf32>
    %61 = vector.extract_strided_slice %57 {offsets = [0, 2], sizes = [8, 288], strides = [1, 1]} : vector<8x342xf32> to vector<8x288xf32>
    %62 = vector.extract_strided_slice %57 {offsets = [0, 18], sizes = [8, 288], strides = [1, 1]} : vector<8x342xf32> to vector<8x288xf32>
    %63 = vector.extract_strided_slice %57 {offsets = [0, 19], sizes = [8, 288], strides = [1, 1]} : vector<8x342xf32> to vector<8x288xf32>
    %64 = vector.extract_strided_slice %57 {offsets = [0, 20], sizes = [8, 288], strides = [1, 1]} : vector<8x342xf32> to vector<8x288xf32>
    %65 = vector.extract_strided_slice %57 {offsets = [0, 36], sizes = [8, 288], strides = [1, 1]} : vector<8x342xf32> to vector<8x288xf32>
    %66 = vector.extract_strided_slice %57 {offsets = [0, 37], sizes = [8, 288], strides = [1, 1]} : vector<8x342xf32> to vector<8x288xf32>
    %67 = vector.extract_strided_slice %57 {offsets = [0, 38], sizes = [8, 288], strides = [1, 1]} : vector<8x342xf32> to vector<8x288xf32>
    %68 = tpu.concatenate %59, %60, %61, %62, %63, %64, %65, %66, %67 in 0 : vector<8x288xf32>, vector<8x288xf32>, vector<8x288xf32>, vector<8x288xf32>, vector<8x288xf32>, vector<8x288xf32>, vector<8x288xf32>, vector<8x288xf32>, vector<8x288xf32> -> vector<72x288xf32>
    %c0_20 = arith.constant 0 : index
    %c0_21 = arith.constant 0 : index
    %69 = vector.load %arg3[%c0_20, %c0_21] : memref<8x72xbf16, #tpu.memory_space<vmem>>, vector<8x72xbf16>
    %70 = arith.truncf %68 : vector<72x288xf32> to vector<72x288xbf16>
    %cst_22 = arith.constant dense<0.000000e+00> : vector<8x288xf32>
    %71 = tpu.matmul %69, %70, %cst_22 {dimension_numbers = #tpu.dot_dimension_numbers<[1], [0], [0], [1], [0, 0, 1, 1], [], []>} : vector<8x72xbf16>, vector<72x288xbf16>, vector<8x288xf32> -> vector<8x288xf32>
    %72 = vector.broadcast %58 : vector<8x1xf32> to vector<8x288xf32>
    %73 = arith.addf %71, %72 : vector<8x288xf32>
    %74 = vector.extract_strided_slice %2 {offsets = [0, 4], sizes = [8, 1], strides = [1, 1]} : vector<8x6xf32> to vector<8x1xf32>
    %75 = vector.extract_strided_slice %2 {offsets = [0, 5], sizes = [8, 1], strides = [1, 1]} : vector<8x6xf32> to vector<8x1xf32>
    %76 = vector.broadcast %0 : vector<1x288xf32> to vector<8x288xf32>
    %77 = arith.mulf %73, %76 : vector<8x288xf32>
    %cst_23 = arith.constant dense<0.000000e+00> : vector<8xf32>
    %78 = vector.multi_reduction <add>, %77, %cst_23 [1] : vector<8x288xf32> to vector<8xf32>
    %79 = vector.shape_cast %78 : vector<8xf32> to vector<8x1xf32>
    %80 = arith.mulf %77, %77 : vector<8x288xf32>
    %cst_24 = arith.constant dense<0.000000e+00> : vector<8xf32>
    %81 = vector.multi_reduction <add>, %80, %cst_24 [1] : vector<8x288xf32> to vector<8xf32>
    %82 = vector.shape_cast %81 : vector<8xf32> to vector<8x1xf32>
    %cst_25 = arith.constant dense<0.000000e+00> : vector<8x1xf32>
    %83 = tpu.matmul %1, %79, %cst_25 {dimension_numbers = #tpu.dot_dimension_numbers<[1], [0], [0], [1], [0, 0, 1, 1], [], []>} : vector<8x8xf32>, vector<8x1xf32>, vector<8x1xf32> -> vector<8x1xf32>
    %cst_26 = arith.constant dense<0.000000e+00> : vector<8x1xf32>
    %84 = tpu.matmul %1, %82, %cst_26 {dimension_numbers = #tpu.dot_dimension_numbers<[1], [0], [0], [1], [0, 0, 1, 1], [], []>} : vector<8x8xf32>, vector<8x1xf32>, vector<8x1xf32> -> vector<8x1xf32>
    %85 = arith.mulf %83, %83 : vector<8x1xf32>
    %86 = arith.subf %84, %85 : vector<8x1xf32>
    %cst_27 = arith.constant 9.99999974E-6 : f32
    %87 = vector.broadcast %cst_27 : f32 to vector<8x1xf32>
    %88 = arith.addf %86, %87 : vector<8x1xf32>
    %89 = math.rsqrt %88 : vector<8x1xf32>
    %90 = vector.broadcast %83 : vector<8x1xf32> to vector<8x288xf32>
    %91 = arith.subf %73, %90 : vector<8x288xf32>
    %92 = vector.broadcast %89 : vector<8x1xf32> to vector<8x288xf32>
    %93 = arith.mulf %91, %92 : vector<8x288xf32>
    %94 = vector.broadcast %74 : vector<8x1xf32> to vector<8x288xf32>
    %95 = arith.mulf %93, %94 : vector<8x288xf32>
    %96 = vector.broadcast %75 : vector<8x1xf32> to vector<8x288xf32>
    %97 = arith.addf %95, %96 : vector<8x288xf32>
    %cst_28 = arith.constant 5.000000e-01 : f32
    %98 = vector.broadcast %cst_28 : f32 to vector<8x288xf32>
    %99 = arith.mulf %98, %97 : vector<8x288xf32>
    %cst_29 = arith.constant 0.707106769 : f32
    %100 = vector.broadcast %cst_29 : f32 to vector<8x288xf32>
    %101 = arith.mulf %97, %100 : vector<8x288xf32>
    %102 = math.erf %101 : vector<8x288xf32>
    %cst_30 = arith.constant 1.000000e+00 : f32
    %103 = vector.broadcast %cst_30 : f32 to vector<8x288xf32>
    %104 = arith.addf %103, %102 : vector<8x288xf32>
    %105 = arith.mulf %99, %104 : vector<8x288xf32>
    %106 = vector.broadcast %0 : vector<1x288xf32> to vector<8x288xf32>
    %107 = arith.mulf %105, %106 : vector<8x288xf32>
    %108 = arith.addf %54, %107 : vector<8x288xf32>
    %c0_31 = arith.constant 0 : index
    %c0_32 = arith.constant 0 : index
    %c0_33 = arith.constant 0 : index
    %109 = vector.load %arg7[%c0_31, %c0_32, %c0_33] : memref<1x8x288xf32, #tpu.memory_space<vmem>>, vector<1x8x288xf32>
    %110 = vector.shape_cast %109 : vector<1x8x288xf32> to vector<8x288xf32>
    %111 = vector.shape_cast %108 : vector<8x288xf32> to vector<1x8x288xf32>
    tpu.vector_store %arg7[%c0_31, %c0_32, %c0_33], %111 {strides = array<i32>} : memref<1x8x288xf32, #tpu.memory_space<vmem>>, vector<1x8x288xf32>,
    return
  }
  func.func @transform_0(%arg0: i32) -> (i32, i32, i32) {
    %c0_i32 = arith.constant 0 : i32
    %c0_i32_0 = arith.constant 0 : i32
    %c0_i32_1 = arith.constant 0 : i32
    return %arg0, %c0_i32, %c0_i32_0 : i32, i32, i32
  }
  func.func @transform_1(%arg0: i32) -> (i32, i32) {
    %c0_i32 = arith.constant 0 : i32
    %c0_i32_0 = arith.constant 0 : i32
    %c0_i32_1 = arith.constant 0 : i32
    return %c0_i32, %c0_i32_0 : i32, i32
  }
  func.func @transform_2(%arg0: i32) -> (i32, i32) {
    %c0_i32 = arith.constant 0 : i32
    %c0_i32_0 = arith.constant 0 : i32
    %c0_i32_1 = arith.constant 0 : i32
    return %c0_i32, %c0_i32_0 : i32, i32
  }
  func.func @transform_3(%arg0: i32) -> (i32, i32) {
    %c0_i32 = arith.constant 0 : i32
    %c0_i32_0 = arith.constant 0 : i32
    %c0_i32_1 = arith.constant 0 : i32
    return %c0_i32, %c0_i32_0 : i32, i32
  }
  func.func @transform_4(%arg0: i32) -> (i32, i32) {
    %c0_i32 = arith.constant 0 : i32
    %c0_i32_0 = arith.constant 0 : i32
    %c0_i32_1 = arith.constant 0 : i32
    return %c0_i32, %c0_i32_0 : i32, i32
  }
  func.func @transform_5(%arg0: i32) -> (i32, i32) {
    %c0_i32 = arith.constant 0 : i32
    %c0_i32_0 = arith.constant 0 : i32
    %c0_i32_1 = arith.constant 0 : i32
    return %c0_i32, %c0_i32_0 : i32, i32
  }
  func.func @transform_6(%arg0: i32) -> (i32, i32, i32) {
    %c0_i32 = arith.constant 0 : i32
    %c0_i32_0 = arith.constant 0 : i32
    %c0_i32_1 = arith.constant 0 : i32
    return %arg0, %c0_i32, %c0_i32_0 : i32, i32, i32
  }
}

</mosaic_0001>

<llo_original>
// kernel: tpu_custom_call.1
$region0: #{tpu_custom_call.1}
  #allocation0 [shape = 'u32[]', space=smem, size = 0x4, offset = 0x4, fixed_abs, tag = 'smem constant byte address 0x4 - core index']
  #allocation1 [shape = 'u32[144,128]{1,0:T(1,128)}', space=vmem, size = 0x12000, scoped, tag = 'internal scratch']
  %s0 = inlined_call_operand.hbm [shape: f32[2,8,342], index: 0, kind: input, shape index: {}]
  %s1 = inlined_call_operand.hbm [shape: bf16[8,72], index: 1, kind: input, shape index: {}]
  %s2 = inlined_call_operand.hbm [shape: bf16[8,72], index: 2, kind: input, shape index: {}]
  %s3 = inlined_call_operand.hbm [shape: f32[8,6], index: 3, kind: input, shape index: {}]
  %s4 = inlined_call_operand.hbm [shape: f32[8,8], index: 4, kind: input, shape index: {}]
  %s5 = inlined_call_operand.vmem [shape: f32[1,288], index: 5, kind: input, shape index: {}]
  %s6 = inlined_call_operand.hbm [shape: f32[2,8,288], index: 6, kind: output, shape index: {}]
  %s7 = sld [smem:[#allocation0]]
  $region77: #{tpu_custom_call.1} parent=0
    _
  %s9 = ssub.s32 1, %s7
  %s10 = scalar_select 0, %s9, %s7
  $region1: #{tpu_custom_call.1} parent=0
    #allocation2 [shape = 'u8[24576]{0}', space=vmem, size = 0x6000, scoped, tag = 'input window, operand 0']
    #allocation3 [shape = 's32[2]{0}', space=sflag, size = 0x8, scoped, tag = 'scoped memory for tpu_custom_call.1']
    #allocation4 [shape = 's32[2]{0}', space=sflag, size = 0x8, scoped, tag = 'scoped memory for tpu_custom_call.1']
    #allocation5 [shape = 'u8[2048]{0}', space=vmem, size = 0x800, scoped, tag = 'input window, operand 1, single buffered']
    #allocation6 [shape = 's32[1]{0}', space=sflag, size = 0x4, scoped, tag = 'scoped memory for tpu_custom_call.1']
    #allocation7 [shape = 'u8[2048]{0}', space=vmem, size = 0x800, scoped, tag = 'input window, operand 2, single buffered']
    #allocation8 [shape = 'u8[4096]{0}', space=vmem, size = 0x1000, scoped, tag = 'input window, operand 3, single buffered']
    #allocation9 [shape = 's32[1]{0}', space=sflag, size = 0x4, scoped, tag = 'scoped memory for tpu_custom_call.1']
    #allocation10 [shape = 'u8[4096]{0}', space=vmem, size = 0x1000, scoped, tag = 'input window, operand 4, single buffered']
    #allocation11 [shape = 'u8[24576]{0}', space=vmem, size = 0x6000, scoped, tag = 'output window, operand 0']
    %11 = vsyncpa [#allocation3], 0
    %s12 = scalar_lea.sflag [#allocation3], 1
    %13 = vsyncpa %s12, 0
    %14 = vsyncpa [#allocation6], 0
    %15 = vsyncpa [#allocation9], 0
    %16 = vsyncpa [#allocation4], 0
    %s17 = scalar_lea.sflag [#allocation4], 1
    %18 = vsyncpa %s17, 0
    loop: start=0, step=1, limit=4
    $region2: #{tpu_custom_call.1} parent=1 // loop_pre_header
      _
    $region3: #{tpu_custom_call.1} parent=1 // loop_header
      %s20 = sphi 0, %s24
      %p21 = scmp.ge.s32.totalorder %s20, 4
      %s30 = sphi 0, %s32
      %s33 = sphi 0, %s30
      %s34 = sphi 0, %s33
      %s50 = sphi 0, %s34
      %s54 = sphi 0, %s54
      %s56 = sphi 0, %s54
      %s57 = sphi 0, %s56
      %s71 = sphi 0, %s57
      %s75 = sphi 0, %s75
      %s77 = sphi 0, %s75
      %s78 = sphi 0, %s77
      %s92 = sphi 0, %s78
      %s96 = sphi 0, %s96
      %s98 = sphi 0, %s96
      %s99 = sphi 0, %s98
      %s113 = sphi 0, %s99
      %s117 = sphi 0, %s117
      %s119 = sphi 0, %s117
      %s120 = sphi 0, %s119
      %s134 = sphi 0, %s120
      %s138 = sphi 0, %s138
      %s140 = sphi 0, %s138
      %s141 = sphi 0, %s140
      %s155 = sphi 0, %s141
      %s161 = sphi 0, %s163
      %s164 = sphi 0, %s161
      %s165 = sphi 0, %s164
      %s181 = sphi 0, %s165
    $region4: #{tpu_custom_call.1} parent=1 // loop_header_branch
      %23 = sbr.rel (%p21) target = $region8
    $region5: #{tpu_custom_call.1} parent=1 // loop_body
      %s25 = ssub.s32 %s20, 1
      %s26 = ssub.s32 %s20, 2
      %s27 = sadd.s32 %s20, 1
      %s28 = ssub.s32 %s20, %s27
      %p29 = scmp.eq.s32.totalorder %s28, 0
      %s31 = sadd.s32 %s30, 1
      %s32 = scalar_select %p29, %s30, %s31
      %p35 = pneg %p29
      %p36 = scmp.eq.s32.totalorder %s20, 1
      %p37 = por %p35, %p36
      %p38 = scmp.ne.s32.totalorder %s30, %s33
      %p39 = scmp.eq.s32.totalorder %s20, 0
      %p40 = por %p38, %p39
      %p41 = scmp.ne.s32.totalorder %s30, %s33
      %p42 = scmp.eq.s32.totalorder %s25, 1
      %p43 = por %p41, %p42
      %p44 = scmp.ne.s32.totalorder %s33, %s34
      %p45 = scmp.eq.s32.totalorder %s25, 0
      %p46 = por %p44, %p45
      %p47 = scmp.ne.s32.totalorder %s33, %s34
      %p48 = scmp.eq.s32.totalorder %s26, 1
      %p49 = por %p47, %p48
      %p51 = scmp.ne.s32.totalorder %s34, %s50
      %p52 = scmp.eq.s32.totalorder %s26, 0
      %p53 = por %p51, %p52
      %s55 = sadd.s32 %s54, 1
      %p58 = scmp.eq.s32.totalorder %s20, 1
      %p59 = scmp.ne.s32.totalorder %s54, %s56
      %p60 = scmp.eq.s32.totalorder %s20, 0
      %p61 = por %p59, %p60
      %p62 = scmp.ne.s32.totalorder %s54, %s56
      %p63 = scmp.eq.s32.totalorder %s25, 1
      %p64 = por %p62, %p63
      %p65 = scmp.ne.s32.totalorder %s56, %s57
      %p66 = scmp.eq.s32.totalorder %s25, 0
      %p67 = por %p65, %p66
      %p68 = scmp.ne.s32.totalorder %s56, %s57
      %p69 = scmp.eq.s32.totalorder %s26, 1
      %p70 = por %p68, %p69
      %p72 = scmp.ne.s32.totalorder %s57, %s71
      %p73 = scmp.eq.s32.totalorder %s26, 0
      %p74 = por %p72, %p73
      %s76 = sadd.s32 %s75, 1
      %p79 = scmp.eq.s32.totalorder %s20, 1
      %p80 = scmp.ne.s32.totalorder %s75, %s77
      %p81 = scmp.eq.s32.totalorder %s20, 0
      %p82 = por %p80, %p81
      %p83 = scmp.ne.s32.totalorder %s75, %s77
      %p84 = scmp.eq.s32.totalorder %s25, 1
      %p85 = por %p83, %p84
      %p86 = scmp.ne.s32.totalorder %s77, %s78
      %p87 = scmp.eq.s32.totalorder %s25, 0
      %p88 = por %p86, %p87
      %p89 = scmp.ne.s32.totalorder %s77, %s78
      %p90 = scmp.eq.s32.totalorder %s26, 1
      %p91 = por %p89, %p90
      %p93 = scmp.ne.s32.totalorder %s78, %s92
      %p94 = scmp.eq.s32.totalorder %s26, 0
      %p95 = por %p93, %p94
      %s97 = sadd.s32 %s96, 1
      %p100 = scmp.eq.s32.totalorder %s20, 1
      %p101 = scmp.ne.s32.totalorder %s96, %s98
      %p102 = scmp.eq.s32.totalorder %s20, 0
      %p103 = por %p101, %p102
      %p104 = scmp.ne.s32.totalorder %s96, %s98
      %p105 = scmp.eq.s32.totalorder %s25, 1
      %p106 = por %p104, %p105
      %p107 = scmp.ne.s32.totalorder %s98, %s99
      %p108 = scmp.eq.s32.totalorder %s25, 0
      %p109 = por %p107, %p108
      %p110 = scmp.ne.s32.totalorder %s98, %s99
      %p111 = scmp.eq.s32.totalorder %s26, 1
      %p112 = por %p110, %p111
      %p114 = scmp.ne.s32.totalorder %s99, %s113
      %p115 = scmp.eq.s32.totalorder %s26, 0
      %p116 = por %p114, %p115
      %s118 = sadd.s32 %s117, 1
      %p121 = scmp.eq.s32.totalorder %s20, 1
      %p122 = scmp.ne.s32.totalorder %s117, %s119
      %p123 = scmp.eq.s32.totalorder %s20, 0
      %p124 = por %p122, %p123
      %p125 = scmp.ne.s32.totalorder %s117, %s119
      %p126 = scmp.eq.s32.totalorder %s25, 1
      %p127 = por %p125, %p126
      %p128 = scmp.ne.s32.totalorder %s119, %s120
      %p129 = scmp.eq.s32.totalorder %s25, 0
      %p130 = por %p128, %p129
      %p131 = scmp.ne.s32.totalorder %s119, %s120
      %p132 = scmp.eq.s32.totalorder %s26, 1
      %p133 = por %p131, %p132
      %p135 = scmp.ne.s32.totalorder %s120, %s134
      %p136 = scmp.eq.s32.totalorder %s26, 0
      %p137 = por %p135, %p136
      %s139 = sadd.s32 %s138, 1
      %p142 = scmp.eq.s32.totalorder %s20, 1
      %p143 = scmp.ne.s32.totalorder %s138, %s140
      %p144 = scmp.eq.s32.totalorder %s20, 0
      %p145 = por %p143, %p144
      %p146 = scmp.ne.s32.totalorder %s138, %s140
      %p147 = scmp.eq.s32.totalorder %s25, 1
      %p148 = por %p146, %p147
      %p149 = scmp.ne.s32.totalorder %s140, %s141
      %p150 = scmp.eq.s32.totalorder %s25, 0
      %p151 = por %p149, %p150
      %p152 = scmp.ne.s32.totalorder %s140, %s141
      %p153 = scmp.eq.s32.totalorder %s26, 1
      %p154 = por %p152, %p153
      %p156 = scmp.ne.s32.totalorder %s141, %s155
      %p157 = scmp.eq.s32.totalorder %s26, 0
      %p158 = por %p156, %p157
      %s159 = ssub.s32 %s20, %s27
      %p160 = scmp.eq.s32.totalorder %s159, 0
      %s162 = sadd.s32 %s161, 1
      %s163 = scalar_select %p160, %s161, %s162
      %p166 = pneg %p160
      %p167 = scmp.eq.s32.totalorder %s20, 1
      %p168 = por %p166, %p167
      %p169 = scmp.ne.s32.totalorder %s161, %s164
      %p170 = scmp.eq.s32.totalorder %s20, 0
      %p171 = por %p169, %p170
      %p172 = scmp.ne.s32.totalorder %s161, %s164
      %p173 = scmp.eq.s32.totalorder %s25, 1
      %p174 = por %p172, %p173
      %p175 = scmp.ne.s32.totalorder %s164, %s165
      %p176 = scmp.eq.s32.totalorder %s25, 0
      %p177 = por %p175, %p176
      %p178 = scmp.ne.s32.totalorder %s164, %s165
      %p179 = scmp.eq.s32.totalorder %s26, 1
      %p180 = por %p178, %p179
      %p182 = scmp.ne.s32.totalorder %s165, %s181
      %p183 = scmp.eq.s32.totalorder %s26, 0
      %p184 = por %p182, %p183
      %p185 = scmp.le.s32.totalorder 1, %s20
      %p186 = scmp.lt.s32.totalorder %s20, 3
      %p187 = pnand %p185, %p186
      %p188 = pneg %p187
      // Predicated region
      $region9: #{tpu_custom_call.1} parent=5 // pred_check
        _
      $region10: #{tpu_custom_call.1} parent=5 // pred_check_branch
        %190 = sbr.rel (%p187) target = $region12
      $region11: #{tpu_custom_call.1} parent=5 // pred_region
        %s191 = ssub.s32 %s20, 1
        // Predicated region
        $region13: #{tpu_custom_call.1} parent=11 // pred_check
          %p192 = pneg %p67
        $region14: #{tpu_custom_call.1} parent=11 // pred_check_branch
          %194 = sbr.rel (%p192) target = $region16
        $region15: #{tpu_custom_call.1} parent=11 // pred_region
          %s196 = ssub.s32 64, 64
          %197 = vsyncadd [#allocation6], %s196
          %s199 = sshll.u32 [#allocation5], 4
          %s200 = int_to_ptr.vmem [resolvable:$true] %s199
          %202 = dma.hbm_to_vmem [thread:$0]  %s1, 64, %s200, [#allocation6]
        $region16: #{tpu_custom_call.1} parent=11 // pred_fallthru
          _
        // Predicated region
        $region17: #{tpu_custom_call.1} parent=11 // pred_check
          %p203 = pneg %p88
        $region18: #{tpu_custom_call.1} parent=11 // pred_check_branch
          %205 = sbr.rel (%p203) target = $region20
        $region19: #{tpu_custom_call.1} parent=11 // pred_region
          %s207 = ssub.s32 64, 64
          %208 = vsyncadd [#allocation6], %s207
          %s210 = sshll.u32 [#allocation7], 4
          %s211 = int_to_ptr.vmem [resolvable:$true] %s210
          %213 = dma.hbm_to_vmem [thread:$0]  %s2, 64, %s211, [#allocation6]
        $region20: #{tpu_custom_call.1} parent=11 // pred_fallthru
          _
        // Predicated region
        $region21: #{tpu_custom_call.1} parent=11 // pred_check
          %p214 = pneg %p109
        $region22: #{tpu_custom_call.1} parent=11 // pred_check_branch
          %216 = sbr.rel (%p214) target = $region24
        $region23: #{tpu_custom_call.1} parent=11 // pred_region
          %s218 = ssub.s32 128, 128
          %219 = vsyncadd [#allocation9], %s218
          %s221 = sshll.u32 [#allocation8], 4
          %s222 = int_to_ptr.vmem [resolvable:$true] %s221
          %224 = dma.hbm_to_vmem [thread:$0]  %s3, 128, %s222, [#allocation9]
        $region24: #{tpu_custom_call.1} parent=11 // pred_fallthru
          _
        // Predicated region
        $region25: #{tpu_custom_call.1} parent=11 // pred_check
          %p225 = pneg %p130
        $region26: #{tpu_custom_call.1} parent=11 // pred_check_branch
          %227 = sbr.rel (%p225) target = $region28
        $region27: #{tpu_custom_call.1} parent=11 // pred_region
          %s229 = ssub.s32 128, 128
          %230 = vsyncadd [#allocation9], %s229
          %s232 = sshll.u32 [#allocation10], 4
          %s233 = int_to_ptr.vmem [resolvable:$true] %s232
          %235 = dma.hbm_to_vmem [thread:$0]  %s4, 128, %s233, [#allocation9]
        $region28: #{tpu_custom_call.1} parent=11 // pred_fallthru
          _
        // Predicated region
        $region29: #{tpu_custom_call.1} parent=11 // pred_check
          %p236 = pneg %p151
        $region30: #{tpu_custom_call.1} parent=11 // pred_check_branch
          %238 = sbr.rel (%p236) target = $region32
        $region31: #{tpu_custom_call.1} parent=11 // pred_region
          _
        $region32: #{tpu_custom_call.1} parent=11 // pred_fallthru
          _
      $region12: #{tpu_custom_call.1} parent=5 // pred_fallthru
        _
      %p239 = scmp.lt.s32.totalorder %s20, 2
      // Predicated region
      $region33: #{tpu_custom_call.1} parent=5 // pred_check
        %p240 = pneg %p239
      $region34: #{tpu_custom_call.1} parent=5 // pred_check_branch
        %242 = sbr.rel (%p240) target = $region36
      $region35: #{tpu_custom_call.1} parent=5 // pred_region
        // Predicated region
        $region37: #{tpu_custom_call.1} parent=35 // pred_check
          %p243 = pneg %p40
        $region38: #{tpu_custom_call.1} parent=35 // pred_check_branch
          %245 = sbr.rel (%p243) target = $region40
        $region39: #{tpu_custom_call.1} parent=35 // pred_region
          %s246 = sand.u32 %s30, 1
          %s247 = scalar_lea.sflag [#allocation3], %s246
          %s248 = sand.u32 %s30, 1
          %s249 = smul.addr %s248, 24
          %s250 = scalar_lea.vmem [#allocation2], %s249
          %s252 = ssub.s32 384, 384
          %253 = vsyncadd %s247, %s252
          %s254 = smul.addr %s20, 3
          %s255 = smul.addr %s254, 128
          %s256 = scalar_lea.hbm %s0, %s255
          %s258 = sshll.u32 %s250, 4
          %s259 = int_to_ptr.vmem [resolvable:$true] %s258
          %261 = dma.hbm_to_vmem [thread:$0]  %s256, 384, %s259, %s247
        $region40: #{tpu_custom_call.1} parent=35 // pred_fallthru
          _
      $region36: #{tpu_custom_call.1} parent=5 // pred_fallthru
        _
      %p262 = scmp.le.s32.totalorder 1, %s20
      %p263 = scmp.lt.s32.totalorder %s20, 3
      %p264 = pnand %p262, %p263
      %p265 = pneg %p264
      // Predicated region
      $region41: #{tpu_custom_call.1} parent=5 // pred_check
        _
      $region42: #{tpu_custom_call.1} parent=5 // pred_check_branch
        %267 = sbr.rel (%p264) target = $region44
      $region43: #{tpu_custom_call.1} parent=5 // pred_region
        %s268 = ssub.s32 %s20, 1
        %s269 = sand.u32 %s33, 1
        %s270 = scalar_lea.sflag [#allocation3], %s269
        %s271 = sand.u32 %s33, 1
        %s272 = smul.addr %s271, 24
        %s273 = scalar_lea.vmem [#allocation2], %s272
        // Predicated region
        $region45: #{tpu_custom_call.1} parent=43 // pred_check
          %p274 = pneg %p46
        $region46: #{tpu_custom_call.1} parent=43 // pred_check_branch
          %276 = sbr.rel (%p274) target = $region48
        $region47: #{tpu_custom_call.1} parent=43 // pred_region
          %277 = dma.done %s270, 384
        $region48: #{tpu_custom_call.1} parent=43 // pred_fallthru
          _
        // Predicated region
        $region49: #{tpu_custom_call.1} parent=43 // pred_check
          %p278 = pneg %p67
        $region50: #{tpu_custom_call.1} parent=43 // pred_check_branch
          %280 = sbr.rel (%p278) target = $region52
        $region51: #{tpu_custom_call.1} parent=43 // pred_region
          %281 = dma.done [#allocation6], 64
        $region52: #{tpu_custom_call.1} parent=43 // pred_fallthru
          _
        // Predicated region
        $region53: #{tpu_custom_call.1} parent=43 // pred_check
          %p282 = pneg %p88
        $region54: #{tpu_custom_call.1} parent=43 // pred_check_branch
          %284 = sbr.rel (%p282) target = $region56
        $region55: #{tpu_custom_call.1} parent=43 // pred_region
          %285 = dma.done [#allocation6], 64
        $region56: #{tpu_custom_call.1} parent=43 // pred_fallthru
          _
        // Predicated region
        $region57: #{tpu_custom_call.1} parent=43 // pred_check
          %p286 = pneg %p109
        $region58: #{tpu_custom_call.1} parent=43 // pred_check_branch
          %288 = sbr.rel (%p286) target = $region60
        $region59: #{tpu_custom_call.1} parent=43 // pred_region
          %289 = dma.done [#allocation9], 128
        $region60: #{tpu_custom_call.1} parent=43 // pred_fallthru
          _
        // Predicated region
        $region61: #{tpu_custom_call.1} parent=43 // pred_check
          %p290 = pneg %p130
        $region62: #{tpu_custom_call.1} parent=43 // pred_check_branch
          %292 = sbr.rel (%p290) target = $region64
        $region63: #{tpu_custom_call.1} parent=43 // pred_region
          %293 = dma.done [#allocation9], 128
        $region64: #{tpu_custom_call.1} parent=43 // pred_fallthru
          _
        %s294 = sand.u32 %s33, 1
        %s295 = scalar_lea.sflag [#allocation3], %s294
        %s296 = sand.u32 %s33, 1
        %s297 = smul.addr %s296, 24
        %s298 = scalar_lea.vmem [#allocation2], %s297
        %p299 = pneg %p46
        %p300 = pneg %p43
        %p301 = pneg %p67
        %p302 = pneg %p64
        %p303 = pneg %p88
        %p304 = pneg %p85
        %p305 = pneg %p109
        %p306 = pneg %p106
        %p307 = pneg %p130
        %p308 = pneg %p127
        %p309 = pneg %p151
        %p310 = pneg %p148
        %p311 = pneg %p177
        %p312 = pneg %p174
        %s313 = sand.u32 %s164, 1
        %s314 = scalar_lea.sflag [#allocation4], %s313
        %s315 = sand.u32 %s164, 1
        %s316 = smul.addr %s315, 24
        %s317 = scalar_lea.vmem [#allocation11], %s316
        %v319 = vld [vmem:[%s5] sm:$0x7]
        %v320 = vld [vmem:[#allocation10] sm:$0xff]
        %v321 = vld [vmem:[#allocation8] sm:$0xff]
        %v322 = vld [vmem:[%s273] sm:$0xff]
        %v323 = vld [vmem:[%s273 + $0x8] sm:$0xff]
        %v324 = vld [vmem:[%s273 + $0x10] sm:$0xff]
        %328 = vrot.lane.b32.xlu0 %v322, 127
        %v329 = vpop.permute.xlu0 %328
        %330 = vrot.lane.b32.xlu0 %v323, 127
        %v331 = vpop.permute.xlu0 %330
        %332 = vrot.lane.b32.xlu0 %v324, 127
        %v333 = vpop.permute.xlu0 %332
        %vm334 = vcmask 1039360
        %v335 = vsel %vm334, %v329, %v331
        %v336 = vsel %vm334, %v331, %v333
        %340 = vrot.lane.b32.xlu0 %v322, 126
        %v341 = vpop.permute.xlu0 %340
        %342 = vrot.lane.b32.xlu0 %v323, 126
        %v343 = vpop.permute.xlu0 %342
        %344 = vrot.lane.b32.xlu0 %v324, 126
        %v345 = vpop.permute.xlu0 %344
        %vm346 = vcmask 1031168
        %v347 = vsel %vm346, %v341, %v343
        %v348 = vsel %vm346, %v343, %v345
        %352 = vrot.lane.b32.xlu0 %v322, 110
        %v353 = vpop.permute.xlu0 %352
        %354 = vrot.lane.b32.xlu0 %v323, 110
        %v355 = vpop.permute.xlu0 %354
        %356 = vrot.lane.b32.xlu0 %v324, 110
        %v357 = vpop.permute.xlu0 %356
        %vm358 = vcmask 900096
        %v359 = vsel %vm358, %v353, %v355
        %v360 = vsel %vm358, %v355, %v357
        %364 = vrot.lane.b32.xlu0 %v322, 109
        %v365 = vpop.permute.xlu0 %364
        %366 = vrot.lane.b32.xlu0 %v323, 109
        %v367 = vpop.permute.xlu0 %366
        %368 = vrot.lane.b32.xlu0 %v324, 109
        %v369 = vpop.permute.xlu0 %368
        %vm370 = vcmask 891904
        %v371 = vsel %vm370, %v365, %v367
        %v372 = vsel %vm370, %v367, %v369
        %376 = vrot.lane.b32.xlu0 %v322, 108
        %v377 = vpop.permute.xlu0 %376
        %378 = vrot.lane.b32.xlu0 %v323, 108
        %v379 = vpop.permute.xlu0 %378
        %380 = vrot.lane.b32.xlu0 %v324, 108
        %v381 = vpop.permute.xlu0 %380
        %vm382 = vcmask 883712
        %v383 = vsel %vm382, %v377, %v379
        %v384 = vsel %vm382, %v379, %v381
        %388 = vrot.lane.b32.xlu0 %v322, 92
        %v389 = vpop.permute.xlu0 %388
        %390 = vrot.lane.b32.xlu0 %v323, 92
        %v391 = vpop.permute.xlu0 %390
        %392 = vrot.lane.b32.xlu0 %v324, 92
        %v393 = vpop.permute.xlu0 %392
        %vm394 = vcmask 752640
        %v395 = vsel %vm394, %v389, %v391
        %v396 = vsel %vm394, %v391, %v393
        %400 = vrot.lane.b32.xlu0 %v322, 91
        %v401 = vpop.permute.xlu0 %400
        %402 = vrot.lane.b32.xlu0 %v323, 91
        %v403 = vpop.permute.xlu0 %402
        %404 = vrot.lane.b32.xlu0 %v324, 91
        %v405 = vpop.permute.xlu0 %404
        %vm406 = vcmask 744448
        %v407 = vsel %vm406, %v401, %v403
        %v408 = vsel %vm406, %v403, %v405
        %412 = vrot.lane.b32.xlu0 %v322, 90
        %v413 = vpop.permute.xlu0 %412
        %414 = vrot.lane.b32.xlu0 %v323, 90
        %v415 = vpop.permute.xlu0 %414
        %416 = vrot.lane.b32.xlu0 %v324, 90
        %v417 = vpop.permute.xlu0 %416
        %vm418 = vcmask 736256
        %v419 = vsel %vm418, %v413, %v415
        %v420 = vsel %vm418, %v415, %v417
        %v424 = vld [vmem:[#allocation5] sm:$0xf]
        %v425 = vpack.c.bf16 %v335, %v322
        %v426 = vpack.c.bf16 %v336, %v323
        %v427 = vpack.c.bf16 %v333, %v324
        %v428 = vpack.c.bf16 %v359, %v347
        %v429 = vpack.c.bf16 %v360, %v348
        %v430 = vpack.c.bf16 %v357, %v345
        %v431 = vpack.c.bf16 %v383, %v371
        %v432 = vpack.c.bf16 %v384, %v372
        %v433 = vpack.c.bf16 %v381, %v369
        %v434 = vpack.c.bf16 %v407, %v395
        %v435 = vpack.c.bf16 %v408, %v396
        %v436 = vpack.c.bf16 %v405, %v393
        %v437 = vpack.c.bf16 %v419, %v419
        %v438 = vpack.c.bf16 %v420, %v420
        %v439 = vpack.c.bf16 %v417, %v417
        %441 = vset.pattern.permute.xlu0 0
        %442 = vperm.xlu0 %441, %v321
        %v443 = vpop.permute.xlu0 %442
        %vm445 = vcmask 588800
        %v447 = vsel %vm445, %v424, 0
        %vm449 = vcmask 1043456
        %v451 = vsel %vm449, %v437, 0
        %v454 = vsel %vm449, %v438, 0
        %v457 = vsel %vm449, %v439, 0
        %459 = vmatprep.subr.bf16.mxu0 0
        %460 = vmatpush1.bf16.msra.mxu0 0
        %461 = vmatprep.subr.bf16.mxu0 0
        %462 = vmatpush1.bf16.msra.mxu0 0
        %463 = vmatprep.subr.bf16.mxu0 0
        %464 = vmatpush1.bf16.msra.mxu0 0
        %465 = vmatprep.subr.bf16.mxu0 %v454
        %466 = vmatpush1.bf16.msra.mxu0 %v451
        %467 = vmatprep.subr.bf16.mxu0 %v435
        %468 = vmatpush1.bf16.msra.mxu0 %v434
        %469 = vmatprep.subr.bf16.mxu0 %v432
        %470 = vmatpush1.bf16.msra.mxu0 %v431
        %471 = vmatprep.subr.bf16.mxu0 %v429
        %472 = vmatpush1.bf16.msra.mxu0 %v428
        %473 = vmatprep.subr.bf16.mxu0 %v426
        %474 = vmatpush1.bf16.msra.mxu0 %v425
        %475 = vmatprep.subr.bf16.mxu0 0
        %476 = vmatpush2.bf16.msra.mxu0 0
        %477 = vmatprep.subr.bf16.mxu0 0
        %478 = vmatpush2.bf16.msra.mxu0 0
        %479 = vmatprep.subr.bf16.mxu0 0
        %480 = vmatpush2.bf16.msra.mxu0 0
        %481 = vmatprep.subr.bf16.mxu0 0
        %482 = vmatpush2.bf16.msra.mxu0 0
        %483 = vmatprep.subr.bf16.mxu0 0
        %484 = vmatpush2.bf16.msra.mxu0 0
        %485 = vmatprep.subr.bf16.mxu0 0
        %486 = vmatpush2.bf16.msra.mxu0 0
        %487 = vmatprep.subr.bf16.mxu0 0
        %488 = vmatpush2.bf16.msra.mxu0 0
        %489 = vmatprep.subr.bf16.mxu0 0
        %490 = vmatpush2.bf16.msra.mxu0 0
        %491 = vmatprep.mubr.bf16.mxu0 0
        %492 = vmatmul.mubr.bf16.gmra.mxu0 %v447
        %v493 = vpop.f32.mrf.mxu0
        %v494 = vadd.f32 %v443, %v493
        %v495 = vpop.f32.mrf.mxu0
        %v496 = vadd.f32 %v443, %v495
        %v497 = vpop.f32.mrf.mxu0
        %v498 = vpop.f32.mrf.mxu0
        %499 = vdwg.mxu0
        %500 = vmatprep.subr.bf16.mxu0 0
        %501 = vmatpush1.bf16.msra.mxu0 0
        %502 = vmatprep.subr.bf16.mxu0 0
        %503 = vmatpush1.bf16.msra.mxu0 0
        %504 = vmatprep.subr.bf16.mxu0 0
        %505 = vmatpush1.bf16.msra.mxu0 0
        %506 = vmatprep.subr.bf16.mxu0 0
        %507 = vmatpush1.bf16.msra.mxu0 %v457
        %508 = vmatprep.subr.bf16.mxu0 0
        %509 = vmatpush1.bf16.msra.mxu0 %v436
        %510 = vmatprep.subr.bf16.mxu0 0
        %511 = vmatpush1.bf16.msra.mxu0 %v433
        %512 = vmatprep.subr.bf16.mxu0 0
        %513 = vmatpush1.bf16.msra.mxu0 %v430
        %514 = vmatprep.subr.bf16.mxu0 0
        %515 = vmatpush1.bf16.msra.mxu0 %v427
        %516 = vmatprep.subr.bf16.mxu0 0
        %517 = vmatpush2.bf16.msra.mxu0 0
        %518 = vmatprep.subr.bf16.mxu0 0
        %519 = vmatpush2.bf16.msra.mxu0 0
        %520 = vmatprep.subr.bf16.mxu0 0
        %521 = vmatpush2.bf16.msra.mxu0 0
        %522 = vmatprep.subr.bf16.mxu0 0
        %523 = vmatpush2.bf16.msra.mxu0 0
        %524 = vmatprep.subr.bf16.mxu0 0
        %525 = vmatpush2.bf16.msra.mxu0 0
        %526 = vmatprep.subr.bf16.mxu0 0
        %527 = vmatpush2.bf16.msra.mxu0 0
        %528 = vmatprep.subr.bf16.mxu0 0
        %529 = vmatpush2.bf16.msra.mxu0 0
        %530 = vmatprep.subr.bf16.mxu0 0
        %531 = vmatpush2.bf16.msra.mxu0 0
        %532 = vmatprep.mubr.bf16.mxu0 0
        %533 = vmatmul.mubr.bf16.gmra.mxu0 %v447
        %v534 = vpop.f32.mrf.mxu0
        %v535 = vadd.f32 %v443, %v534
        %v536 = vpop.f32.mrf.mxu0
        %v537 = vpop.f32.mrf.mxu0
        %v538 = vpop.f32.mrf.mxu0
        %539 = vdwg.mxu0
        %v541 = vlaneseq
        %v542 = vshrl.u32 %v541, 7
        %v543 = vsub.s32 0, %v542
        %v544 = vrot.slane %v319, %v543
        %v545 = vlaneseq
        %v546 = vshrl.u32 %v545, 7
        %v547 = vsub.s32 1, %v546
        %v548 = vrot.slane %v319, %v547
        %v549 = vlaneseq
        %v550 = vshrl.u32 %v549, 7
        %v551 = vsub.s32 2, %v550
        %v552 = vrot.slane %v319, %v551
        %v556 = vmul.f32 %v494, %v544
        %v557 = vmul.f32 %v496, %v548
        %v558 = vmul.f32 %v535, %v552
        %v559 = vadd.f32 %v556, %v557
        %vm560 = vcmask 261120
        %v561 = vsel %vm560, %v558, 0.0
        %v562 = vadd.f32 %v559, %v561
        %563 = vadd.xlane.f32.xlu0 %v562
        %v564 = vpop.xlane.xlu0 %563
        %v565 = vmul.f32 %v556, %v556
        %v566 = vmul.f32 %v557, %v557
        %v567 = vmul.f32 %v558, %v558
        %v568 = vadd.f32 %v565, %v566
        %v569 = vsel %vm560, %v567, 0.0
        %v570 = vadd.f32 %v568, %v569
        %571 = vadd.xlane.f32.xlu0 %v570
        %v572 = vpop.xlane.xlu0 %571
        %vm573 = vcmask 64512
        %v575 = vsel %vm573, %v320, 0
        %577 = vmatprep.subr.mxu0 0.0
        %578 = vmatpush1.msra.mxu0 0.0
        %579 = vmatprep.subr.mxu0 0.0
        %580 = vmatpush1.msra.mxu0 0.0
        %581 = vmatprep.subr.mxu0 0.0
        %582 = vmatpush1.msra.mxu0 0.0
        %583 = vmatprep.subr.mxu0 0.0
        %584 = vmatpush1.msra.mxu0 0.0
        %585 = vmatprep.subr.mxu0 0.0
        %586 = vmatpush1.msra.mxu0 0.0
        %587 = vmatprep.subr.mxu0 0.0
        %588 = vmatpush1.msra.mxu0 0.0
        %589 = vmatprep.subr.mxu0 0.0
        %590 = vmatpush1.msra.mxu0 0.0
        %591 = vmatprep.subr.mxu0 0.0
        %592 = vmatpush1.msra.mxu0 0.0
        %593 = vmatprep.subr.mxu0 0.0
        %594 = vmatpush1.msra.mxu0 0.0
        %595 = vmatprep.subr.mxu0 0.0
        %596 = vmatpush1.msra.mxu0 0.0
        %597 = vmatprep.subr.mxu0 0.0
        %598 = vmatpush1.msra.mxu0 0.0
        %599 = vmatprep.subr.mxu0 0.0
        %600 = vmatpush1.msra.mxu0 0.0
        %601 = vmatprep.subr.mxu0 0.0
        %602 = vmatpush1.msra.mxu0 0.0
        %603 = vmatprep.subr.mxu0 0.0
        %604 = vmatpush1.msra.mxu0 0.0
        %605 = vmatprep.subr.mxu0 0.0
        %606 = vmatpush1.msra.mxu0 0.0
        %607 = vmatprep.subr.mxu0 0.0
        %608 = vmatpush1.msra.mxu0 %v564
        %609 = vmatprep.subr.mxu0 0.0
        %610 = vmatpush2.msra.mxu0 0.0
        %611 = vmatprep.subr.mxu0 0.0
        %612 = vmatpush2.msra.mxu0 0.0
        %613 = vmatprep.subr.mxu0 0.0
        %614 = vmatpush2.msra.mxu0 0.0
        %615 = vmatprep.subr.mxu0 0.0
        %616 = vmatpush2.msra.mxu0 0.0
        %617 = vmatprep.subr.mxu0 0.0
        %618 = vmatpush2.msra.mxu0 0.0
        %619 = vmatprep.subr.mxu0 0.0
        %620 = vmatpush2.msra.mxu0 0.0
        %621 = vmatprep.subr.mxu0 0.0
        %622 = vmatpush2.msra.mxu0 0.0
        %623 = vmatprep.subr.mxu0 0.0
        %624 = vmatpush2.msra.mxu0 0.0
        %625 = vmatprep.subr.mxu0 0.0
        %626 = vmatpush2.msra.mxu0 0.0
        %627 = vmatprep.subr.mxu0 0.0
        %628 = vmatpush2.msra.mxu0 0.0
        %629 = vmatprep.subr.mxu0 0.0
        %630 = vmatpush2.msra.mxu0 0.0
        %631 = vmatprep.subr.mxu0 0.0
        %632 = vmatpush2.msra.mxu0 0.0
        %633 = vmatprep.subr.mxu0 0.0
        %634 = vmatpush2.msra.mxu0 0.0
        %635 = vmatprep.subr.mxu0 0.0
        %636 = vmatpush2.msra.mxu0 0.0
        %637 = vmatprep.subr.mxu0 0.0
        %638 = vmatpush2.msra.mxu0 0.0
        %639 = vmatprep.subr.mxu0 0.0
        %640 = vmatpush2.msra.mxu0 0.0
        %641 = vmatprep.mubr.f32.mxu0 0.0
        %642 = vmatmul.mubr.f32.gmra.mxu0 %v575
        %v643 = vpop.f32.mrf.mxu0
        %v644 = vadd.f32 0.0, %v643
        %v645 = vpop.f32.mrf.mxu0
        %646 = vdwg.mxu0
        %647 = vmatprep.subr.mxu0 0.0
        %648 = vmatpush1.msra.mxu0 0.0
        %649 = vmatprep.subr.mxu0 0.0
        %650 = vmatpush1.msra.mxu0 0.0
        %651 = vmatprep.subr.mxu0 0.0
        %652 = vmatpush1.msra.mxu0 0.0
        %653 = vmatprep.subr.mxu0 0.0
        %654 = vmatpush1.msra.mxu0 0.0
        %655 = vmatprep.subr.mxu0 0.0
        %656 = vmatpush1.msra.mxu0 0.0
        %657 = vmatprep.subr.mxu0 0.0
        %658 = vmatpush1.msra.mxu0 0.0
        %659 = vmatprep.subr.mxu0 0.0
        %660 = vmatpush1.msra.mxu0 0.0
        %661 = vmatprep.subr.mxu0 0.0
        %662 = vmatpush1.msra.mxu0 0.0
        %663 = vmatprep.subr.mxu0 0.0
        %664 = vmatpush1.msra.mxu0 0.0
        %665 = vmatprep.subr.mxu0 0.0
        %666 = vmatpush1.msra.mxu0 0.0
        %667 = vmatprep.subr.mxu0 0.0
        %668 = vmatpush1.msra.mxu0 0.0
        %669 = vmatprep.subr.mxu0 0.0
        %670 = vmatpush1.msra.mxu0 0.0
        %671 = vmatprep.subr.mxu0 0.0
        %672 = vmatpush1.msra.mxu0 0.0
        %673 = vmatprep.subr.mxu0 0.0
        %674 = vmatpush1.msra.mxu0 0.0
        %675 = vmatprep.subr.mxu0 0.0
        %676 = vmatpush1.msra.mxu0 0.0
        %677 = vmatprep.subr.mxu0 0.0
        %678 = vmatpush1.msra.mxu0 %v572
        %679 = vmatprep.subr.mxu0 0.0
        %680 = vmatpush2.msra.mxu0 0.0
        %681 = vmatprep.subr.mxu0 0.0
        %682 = vmatpush2.msra.mxu0 0.0
        %683 = vmatprep.subr.mxu0 0.0
        %684 = vmatpush2.msra.mxu0 0.0
        %685 = vmatprep.subr.mxu0 0.0
        %686 = vmatpush2.msra.mxu0 0.0
        %687 = vmatprep.subr.mxu0 0.0
        %688 = vmatpush2.msra.mxu0 0.0
        %689 = vmatprep.subr.mxu0 0.0
        %690 = vmatpush2.msra.mxu0 0.0
        %691 = vmatprep.subr.mxu0 0.0
        %692 = vmatpush2.msra.mxu0 0.0
        %693 = vmatprep.subr.mxu0 0.0
        %694 = vmatpush2.msra.mxu0 0.0
        %695 = vmatprep.subr.mxu0 0.0
        %696 = vmatpush2.msra.mxu0 0.0
        %697 = vmatprep.subr.mxu0 0.0
        %698 = vmatpush2.msra.mxu0 0.0
        %699 = vmatprep.subr.mxu0 0.0
        %700 = vmatpush2.msra.mxu0 0.0
        %701 = vmatprep.subr.mxu0 0.0
        %702 = vmatpush2.msra.mxu0 0.0
        %703 = vmatprep.subr.mxu0 0.0
        %704 = vmatpush2.msra.mxu0 0.0
        %705 = vmatprep.subr.mxu0 0.0
        %706 = vmatpush2.msra.mxu0 0.0
        %707 = vmatprep.subr.mxu0 0.0
        %708 = vmatpush2.msra.mxu0 0.0
        %709 = vmatprep.subr.mxu0 0.0
        %710 = vmatpush2.msra.mxu0 0.0
        %711 = vmatprep.mubr.f32.mxu0 0.0
        %712 = vmatmul.mubr.f32.gmra.mxu0 %v575
        %v713 = vpop.f32.mrf.mxu0
        %v714 = vadd.f32 0.0, %v713
        %v715 = vpop.f32.mrf.mxu0
        %716 = vdwg.mxu0
        %v717 = vmul.f32 %v644, %v644
        %v718 = vsub.f32 %v714, %v717
        %v719 = vadd.f32 %v718, 1e-05
        %v720 = vrsqrt.pop %v719
        %722 = vset.pattern.permute.xlu0 0
        %723 = vperm.xlu0 %722, %v644
        %v724 = vpop.permute.xlu0 %723
        %v726 = vsub.f32 %v494, %v724
        %v727 = vsub.f32 %v496, %v724
        %v728 = vsub.f32 %v535, %v724
        %730 = vset.pattern.permute.xlu0 0
        %731 = vperm.xlu0 %730, %v720
        %v732 = vpop.permute.xlu0 %731
        %v734 = vmul.f32 %v726, %v732
        %v735 = vmul.f32 %v727, %v732
        %v736 = vmul.f32 %v728, %v732
        %737 = vset.pattern.permute.xlu0 1
        %738 = vperm.xlu0 %737, %v321
        %v739 = vpop.permute.xlu0 %738
        %v741 = vmul.f32 %v734, %v739
        %v742 = vmul.f32 %v735, %v739
        %v743 = vmul.f32 %v736, %v739
        %744 = vset.pattern.permute.xlu0 2
        %745 = vperm.xlu0 %744, %v321
        %v746 = vpop.permute.xlu0 %745
        %v748 = vadd.f32 %v741, %v746
        %v749 = vadd.f32 %v742, %v746
        %v750 = vadd.f32 %v743, %v746
        %v751 = vmul.f32 %v748, 0.5
        %v752 = vmul.f32 %v749, 0.5
        %v753 = vmul.f32 %v750, 0.5
        %v754 = vmul.f32 %v748, 0.70710677
        %v755 = vmul.f32 %v749, 0.70710677
        %v756 = vmul.f32 %v750, 0.70710677
        %v757 = verf.f32.pop %v754
        %v758 = verf.f32.pop %v755
        %v759 = verf.f32.pop %v756
        %v760 = vadd.f32 %v757, 1.0
        %v761 = vadd.f32 %v758, 1.0
        %v762 = vadd.f32 %v759, 1.0
        %v763 = vmul.f32 %v751, %v760
        %v764 = vmul.f32 %v752, %v761
        %v765 = vmul.f32 %v753, %v762
        %v766 = vmul.f32 %v763, %v544
        %v767 = vmul.f32 %v764, %v548
        %v768 = vmul.f32 %v765, %v552
        %772 = vrot.lane.b32.xlu0 %v766, 19
        %v773 = vpop.permute.xlu0 %772
        %774 = vrot.lane.b32.xlu0 %v767, 19
        %v775 = vpop.permute.xlu0 %774
        %776 = vrot.lane.b32.xlu0 %v768, 19
        %v777 = vpop.permute.xlu0 %776
        %vm778 = vcmask 154624
        %v779 = vsel %vm778, %v773, %v775
        %v780 = vsel %vm778, %v775, %v777
        %v784 = vsel %vm778, 0.0, %v773
        %vm785 = vcmask 416768
        %v786 = vsel %vm785, %v780, 0.0
        %789 = vrot.lane.b32.xlu0 %v784, 127
        %v790 = vpop.permute.xlu0 %789
        %791 = vrot.lane.b32.xlu0 %v779, 127
        %v792 = vpop.permute.xlu0 %791
        %793 = vrot.lane.b32.xlu0 %v786, 127
        %v794 = vpop.permute.xlu0 %793
        %v795 = vsel %vm334, %v790, %v792
        %v796 = vsel %vm334, %v792, %v794
        %800 = vrot.lane.b32.xlu0 %v784, 126
        %v801 = vpop.permute.xlu0 %800
        %802 = vrot.lane.b32.xlu0 %v779, 126
        %v803 = vpop.permute.xlu0 %802
        %804 = vrot.lane.b32.xlu0 %v786, 126
        %v805 = vpop.permute.xlu0 %804
        %v806 = vsel %vm346, %v801, %v803
        %v807 = vsel %vm346, %v803, %v805
        %811 = vrot.lane.b32.xlu0 %v784, 110
        %v812 = vpop.permute.xlu0 %811
        %813 = vrot.lane.b32.xlu0 %v779, 110
        %v814 = vpop.permute.xlu0 %813
        %815 = vrot.lane.b32.xlu0 %v786, 110
        %v816 = vpop.permute.xlu0 %815
        %v817 = vsel %vm358, %v812, %v814
        %v818 = vsel %vm358, %v814, %v816
        %822 = vrot.lane.b32.xlu0 %v784, 109
        %v823 = vpop.permute.xlu0 %822
        %824 = vrot.lane.b32.xlu0 %v779, 109
        %v825 = vpop.permute.xlu0 %824
        %826 = vrot.lane.b32.xlu0 %v786, 109
        %v827 = vpop.permute.xlu0 %826
        %v828 = vsel %vm370, %v823, %v825
        %v829 = vsel %vm370, %v825, %v827
        %833 = vrot.lane.b32.xlu0 %v784, 108
        %v834 = vpop.permute.xlu0 %833
        %835 = vrot.lane.b32.xlu0 %v779, 108
        %v836 = vpop.permute.xlu0 %835
        %837 = vrot.lane.b32.xlu0 %v786, 108
        %v838 = vpop.permute.xlu0 %837
        %v839 = vsel %vm382, %v834, %v836
        %v840 = vsel %vm382, %v836, %v838
        %844 = vrot.lane.b32.xlu0 %v784, 92
        %v845 = vpop.permute.xlu0 %844
        %846 = vrot.lane.b32.xlu0 %v779, 92
        %v847 = vpop.permute.xlu0 %846
        %848 = vrot.lane.b32.xlu0 %v786, 92
        %v849 = vpop.permute.xlu0 %848
        %v850 = vsel %vm394, %v845, %v847
        %v851 = vsel %vm394, %v847, %v849
        %855 = vrot.lane.b32.xlu0 %v784, 91
        %v856 = vpop.permute.xlu0 %855
        %857 = vrot.lane.b32.xlu0 %v779, 91
        %v858 = vpop.permute.xlu0 %857
        %859 = vrot.lane.b32.xlu0 %v786, 91
        %v860 = vpop.permute.xlu0 %859
        %v861 = vsel %vm406, %v856, %v858
        %v862 = vsel %vm406, %v858, %v860
        %866 = vrot.lane.b32.xlu0 %v784, 90
        %v867 = vpop.permute.xlu0 %866
        %868 = vrot.lane.b32.xlu0 %v779, 90
        %v869 = vpop.permute.xlu0 %868
        %870 = vrot.lane.b32.xlu0 %v786, 90
        %v871 = vpop.permute.xlu0 %870
        %v872 = vsel %vm418, %v867, %v869
        %v873 = vsel %vm418, %v869, %v871
        %v877 = vld [vmem:[#allocation7] sm:$0xf]
        %v878 = vpack.c.bf16 %v795, %v784
        %v879 = vpack.c.bf16 %v796, %v779
        %v880 = vpack.c.bf16 %v794, %v786
        %v881 = vpack.c.bf16 %v817, %v806
        %v882 = vpack.c.bf16 %v818, %v807
        %v883 = vpack.c.bf16 %v816, %v805
        %v884 = vpack.c.bf16 %v839, %v828
        %v885 = vpack.c.bf16 %v840, %v829
        %v886 = vpack.c.bf16 %v838, %v827
        %v887 = vpack.c.bf16 %v861, %v850
        %v888 = vpack.c.bf16 %v862, %v851
        %v889 = vpack.c.bf16 %v860, %v849
        %v890 = vpack.c.bf16 %v872, %v872
        %v891 = vpack.c.bf16 %v873, %v873
        %v892 = vpack.c.bf16 %v871, %v871
        %893 = vset.pattern.permute.xlu0 3
        %894 = vperm.xlu0 %893, %v321
        %v895 = vpop.permute.xlu0 %894
        %v898 = vsel %vm445, %v877, 0
        %v901 = vsel %vm449, %v890, 0
        %v904 = vsel %vm449, %v891, 0
        %v907 = vsel %vm449, %v892, 0
        %909 = vmatprep.subr.bf16.mxu0 0
        %910 = vmatpush1.bf16.msra.mxu0 0
        %911 = vmatprep.subr.bf16.mxu0 0
        %912 = vmatpush1.bf16.msra.mxu0 0
        %913 = vmatprep.subr.bf16.mxu0 0
        %914 = vmatpush1.bf16.msra.mxu0 0
        %915 = vmatprep.subr.bf16.mxu0 %v904
        %916 = vmatpush1.bf16.msra.mxu0 %v901
        %917 = vmatprep.subr.bf16.mxu0 %v888
        %918 = vmatpush1.bf16.msra.mxu0 %v887
        %919 = vmatprep.subr.bf16.mxu0 %v885
        %920 = vmatpush1.bf16.msra.mxu0 %v884
        %921 = vmatprep.subr.bf16.mxu0 %v882
        %922 = vmatpush1.bf16.msra.mxu0 %v881
        %923 = vmatprep.subr.bf16.mxu0 %v879
        %924 = vmatpush1.bf16.msra.mxu0 %v878
        %925 = vmatprep.subr.bf16.mxu0 0
        %926 = vmatpush2.bf16.msra.mxu0 0
        %927 = vmatprep.subr.bf16.mxu0 0
        %928 = vmatpush2.bf16.msra.mxu0 0
        %929 = vmatprep.subr.bf16.mxu0 0
        %930 = vmatpush2.bf16.msra.mxu0 0
        %931 = vmatprep.subr.bf16.mxu0 0
        %932 = vmatpush2.bf16.msra.mxu0 0
        %933 = vmatprep.subr.bf16.mxu0 0
        %934 = vmatpush2.bf16.msra.mxu0 0
        %935 = vmatprep.subr.bf16.mxu0 0
        %936 = vmatpush2.bf16.msra.mxu0 0
        %937 = vmatprep.subr.bf16.mxu0 0
        %938 = vmatpush2.bf16.msra.mxu0 0
        %939 = vmatprep.subr.bf16.mxu0 0
        %940 = vmatpush2.bf16.msra.mxu0 0
        %941 = vmatprep.mubr.bf16.mxu0 0
        %942 = vmatmul.mubr.bf16.gmra.mxu0 %v898
        %v943 = vpop.f32.mrf.mxu0
        %v944 = vadd.f32 %v895, %v943
        %v945 = vpop.f32.mrf.mxu0
        %v946 = vadd.f32 %v895, %v945
        %v947 = vpop.f32.mrf.mxu0
        %v948 = vpop.f32.mrf.mxu0
        %949 = vdwg.mxu0
        %950 = vmatprep.subr.bf16.mxu0 0
        %951 = vmatpush1.bf16.msra.mxu0 0
        %952 = vmatprep.subr.bf16.mxu0 0
        %953 = vmatpush1.bf16.msra.mxu0 0
        %954 = vmatprep.subr.bf16.mxu0 0
        %955 = vmatpush1.bf16.msra.mxu0 0
        %956 = vmatprep.subr.bf16.mxu0 0
        %957 = vmatpush1.bf16.msra.mxu0 %v907
        %958 = vmatprep.subr.bf16.mxu0 0
        %959 = vmatpush1.bf16.msra.mxu0 %v889
        %960 = vmatprep.subr.bf16.mxu0 0
        %961 = vmatpush1.bf16.msra.mxu0 %v886
        %962 = vmatprep.subr.bf16.mxu0 0
        %963 = vmatpush1.bf16.msra.mxu0 %v883
        %964 = vmatprep.subr.bf16.mxu0 0
        %965 = vmatpush1.bf16.msra.mxu0 %v880
        %966 = vmatprep.subr.bf16.mxu0 0
        %967 = vmatpush2.bf16.msra.mxu0 0
        %968 = vmatprep.subr.bf16.mxu0 0
        %969 = vmatpush2.bf16.msra.mxu0 0
        %970 = vmatprep.subr.bf16.mxu0 0
        %971 = vmatpush2.bf16.msra.mxu0 0
        %972 = vmatprep.subr.bf16.mxu0 0
        %973 = vmatpush2.bf16.msra.mxu0 0
        %974 = vmatprep.subr.bf16.mxu0 0
        %975 = vmatpush2.bf16.msra.mxu0 0
        %976 = vmatprep.subr.bf16.mxu0 0
        %977 = vmatpush2.bf16.msra.mxu0 0
        %978 = vmatprep.subr.bf16.mxu0 0
        %979 = vmatpush2.bf16.msra.mxu0 0
        %980 = vmatprep.subr.bf16.mxu0 0
        %981 = vmatpush2.bf16.msra.mxu0 0
        %982 = vmatprep.mubr.bf16.mxu0 0
        %983 = vmatmul.mubr.bf16.gmra.mxu0 %v898
        %v984 = vpop.f32.mrf.mxu0
        %v985 = vadd.f32 %v895, %v984
        %v986 = vpop.f32.mrf.mxu0
        %v987 = vpop.f32.mrf.mxu0
        %v988 = vpop.f32.mrf.mxu0
        %989 = vdwg.mxu0
        %v990 = vmul.f32 %v944, %v544
        %v991 = vmul.f32 %v946, %v548
        %v992 = vmul.f32 %v985, %v552
        %v993 = vadd.f32 %v990, %v991
        %v994 = vsel %vm560, %v992, 0.0
        %v995 = vadd.f32 %v993, %v994
        %996 = vadd.xlane.f32.xlu0 %v995
        %v997 = vpop.xlane.xlu0 %996
        %v998 = vmul.f32 %v990, %v990
        %v999 = vmul.f32 %v991, %v991
        %v1000 = vmul.f32 %v992, %v992
        %v1001 = vadd.f32 %v998, %v999
        %v1002 = vsel %vm560, %v1000, 0.0
        %v1003 = vadd.f32 %v1001, %v1002
        %1004 = vadd.xlane.f32.xlu0 %v1003
        %v1005 = vpop.xlane.xlu0 %1004
        %1006 = vmatprep.subr.mxu0 0.0
        %1007 = vmatpush1.msra.mxu0 0.0
        %1008 = vmatprep.subr.mxu0 0.0
        %1009 = vmatpush1.msra.mxu0 0.0
        %1010 = vmatprep.subr.mxu0 0.0
        %1011 = vmatpush1.msra.mxu0 0.0
        %1012 = vmatprep.subr.mxu0 0.0
        %1013 = vmatpush1.msra.mxu0 0.0
        %1014 = vmatprep.subr.mxu0 0.0
        %1015 = vmatpush1.msra.mxu0 0.0
        %1016 = vmatprep.subr.mxu0 0.0
        %1017 = vmatpush1.msra.mxu0 0.0
        %1018 = vmatprep.subr.mxu0 0.0
        %1019 = vmatpush1.msra.mxu0 0.0
        %1020 = vmatprep.subr.mxu0 0.0
        %1021 = vmatpush1.msra.mxu0 0.0
        %1022 = vmatprep.subr.mxu0 0.0
        %1023 = vmatpush1.msra.mxu0 0.0
        %1024 = vmatprep.subr.mxu0 0.0
        %1025 = vmatpush1.msra.mxu0 0.0
        %1026 = vmatprep.subr.mxu0 0.0
        %1027 = vmatpush1.msra.mxu0 0.0
        %1028 = vmatprep.subr.mxu0 0.0
        %1029 = vmatpush1.msra.mxu0 0.0
        %1030 = vmatprep.subr.mxu0 0.0
        %1031 = vmatpush1.msra.mxu0 0.0
        %1032 = vmatprep.subr.mxu0 0.0
        %1033 = vmatpush1.msra.mxu0 0.0
        %1034 = vmatprep.subr.mxu0 0.0
        %1035 = vmatpush1.msra.mxu0 0.0
        %1036 = vmatprep.subr.mxu0 0.0
        %1037 = vmatpush1.msra.mxu0 %v997
        %1038 = vmatprep.subr.mxu0 0.0
        %1039 = vmatpush2.msra.mxu0 0.0
        %1040 = vmatprep.subr.mxu0 0.0
        %1041 = vmatpush2.msra.mxu0 0.0
        %1042 = vmatprep.subr.mxu0 0.0
        %1043 = vmatpush2.msra.mxu0 0.0
        %1044 = vmatprep.subr.mxu0 0.0
        %1045 = vmatpush2.msra.mxu0 0.0
        %1046 = vmatprep.subr.mxu0 0.0
        %1047 = vmatpush2.msra.mxu0 0.0
        %1048 = vmatprep.subr.mxu0 0.0
        %1049 = vmatpush2.msra.mxu0 0.0
        %1050 = vmatprep.subr.mxu0 0.0
        %1051 = vmatpush2.msra.mxu0 0.0
        %1052 = vmatprep.subr.mxu0 0.0
        %1053 = vmatpush2.msra.mxu0 0.0
        %1054 = vmatprep.subr.mxu0 0.0
        %1055 = vmatpush2.msra.mxu0 0.0
        %1056 = vmatprep.subr.mxu0 0.0
        %1057 = vmatpush2.msra.mxu0 0.0
        %1058 = vmatprep.subr.mxu0 0.0
        %1059 = vmatpush2.msra.mxu0 0.0
        %1060 = vmatprep.subr.mxu0 0.0
        %1061 = vmatpush2.msra.mxu0 0.0
        %1062 = vmatprep.subr.mxu0 0.0
        %1063 = vmatpush2.msra.mxu0 0.0
        %1064 = vmatprep.subr.mxu0 0.0
        %1065 = vmatpush2.msra.mxu0 0.0
        %1066 = vmatprep.subr.mxu0 0.0
        %1067 = vmatpush2.msra.mxu0 0.0
        %1068 = vmatprep.subr.mxu0 0.0
        %1069 = vmatpush2.msra.mxu0 0.0
        %1070 = vmatprep.mubr.f32.mxu0 0.0
        %1071 = vmatmul.mubr.f32.gmra.mxu0 %v575
        %v1072 = vpop.f32.mrf.mxu0
        %v1073 = vadd.f32 0.0, %v1072
        %v1074 = vpop.f32.mrf.mxu0
        %1075 = vdwg.mxu0
        %1076 = vmatprep.subr.mxu0 0.0
        %1077 = vmatpush1.msra.mxu0 0.0
        %1078 = vmatprep.subr.mxu0 0.0
        %1079 = vmatpush1.msra.mxu0 0.0
        %1080 = vmatprep.subr.mxu0 0.0
        %1081 = vmatpush1.msra.mxu0 0.0
        %1082 = vmatprep.subr.mxu0 0.0
        %1083 = vmatpush1.msra.mxu0 0.0
        %1084 = vmatprep.subr.mxu0 0.0
        %1085 = vmatpush1.msra.mxu0 0.0
        %1086 = vmatprep.subr.mxu0 0.0
        %1087 = vmatpush1.msra.mxu0 0.0
        %1088 = vmatprep.subr.mxu0 0.0
        %1089 = vmatpush1.msra.mxu0 0.0
        %1090 = vmatprep.subr.mxu0 0.0
        %1091 = vmatpush1.msra.mxu0 0.0
        %1092 = vmatprep.subr.mxu0 0.0
        %1093 = vmatpush1.msra.mxu0 0.0
        %1094 = vmatprep.subr.mxu0 0.0
        %1095 = vmatpush1.msra.mxu0 0.0
        %1096 = vmatprep.subr.mxu0 0.0
        %1097 = vmatpush1.msra.mxu0 0.0
        %1098 = vmatprep.subr.mxu0 0.0
        %1099 = vmatpush1.msra.mxu0 0.0
        %1100 = vmatprep.subr.mxu0 0.0
        %1101 = vmatpush1.msra.mxu0 0.0
        %1102 = vmatprep.subr.mxu0 0.0
        %1103 = vmatpush1.msra.mxu0 0.0
        %1104 = vmatprep.subr.mxu0 0.0
        %1105 = vmatpush1.msra.mxu0 0.0
        %1106 = vmatprep.subr.mxu0 0.0
        %1107 = vmatpush1.msra.mxu0 %v1005
        %1108 = vmatprep.subr.mxu0 0.0
        %1109 = vmatpush2.msra.mxu0 0.0
        %1110 = vmatprep.subr.mxu0 0.0
        %1111 = vmatpush2.msra.mxu0 0.0
        %1112 = vmatprep.subr.mxu0 0.0
        %1113 = vmatpush2.msra.mxu0 0.0
        %1114 = vmatprep.subr.mxu0 0.0
        %1115 = vmatpush2.msra.mxu0 0.0
        %1116 = vmatprep.subr.mxu0 0.0
        %1117 = vmatpush2.msra.mxu0 0.0
        %1118 = vmatprep.subr.mxu0 0.0
        %1119 = vmatpush2.msra.mxu0 0.0
        %1120 = vmatprep.subr.mxu0 0.0
        %1121 = vmatpush2.msra.mxu0 0.0
        %1122 = vmatprep.subr.mxu0 0.0
        %1123 = vmatpush2.msra.mxu0 0.0
        %1124 = vmatprep.subr.mxu0 0.0
        %1125 = vmatpush2.msra.mxu0 0.0
        %1126 = vmatprep.subr.mxu0 0.0
        %1127 = vmatpush2.msra.mxu0 0.0
        %1128 = vmatprep.subr.mxu0 0.0
        %1129 = vmatpush2.msra.mxu0 0.0
        %1130 = vmatprep.subr.mxu0 0.0
        %1131 = vmatpush2.msra.mxu0 0.0
        %1132 = vmatprep.subr.mxu0 0.0
        %1133 = vmatpush2.msra.mxu0 0.0
        %1134 = vmatprep.subr.mxu0 0.0
        %1135 = vmatpush2.msra.mxu0 0.0
        %1136 = vmatprep.subr.mxu0 0.0
        %1137 = vmatpush2.msra.mxu0 0.0
        %1138 = vmatprep.subr.mxu0 0.0
        %1139 = vmatpush2.msra.mxu0 0.0
        %1140 = vmatprep.mubr.f32.mxu0 0.0
        %1141 = vmatmul.mubr.f32.gmra.mxu0 %v575
        %v1142 = vpop.f32.mrf.mxu0
        %v1143 = vadd.f32 0.0, %v1142
        %v1144 = vpop.f32.mrf.mxu0
        %1145 = vdwg.mxu0
        %v1146 = vmul.f32 %v1073, %v1073
        %v1147 = vsub.f32 %v1143, %v1146
        %v1148 = vadd.f32 %v1147, 1e-05
        %v1149 = vrsqrt.pop %v1148
        %1151 = vset.pattern.permute.xlu0 0
        %1152 = vperm.xlu0 %1151, %v1073
        %v1153 = vpop.permute.xlu0 %1152
        %v1155 = vsub.f32 %v944, %v1153
        %v1156 = vsub.f32 %v946, %v1153
        %v1157 = vsub.f32 %v985, %v1153
        %1159 = vset.pattern.permute.xlu0 0
        %1160 = vperm.xlu0 %1159, %v1149
        %v1161 = vpop.permute.xlu0 %1160
        %v1163 = vmul.f32 %v1155, %v1161
        %v1164 = vmul.f32 %v1156, %v1161
        %v1165 = vmul.f32 %v1157, %v1161
        %1166 = vset.pattern.permute.xlu0 4
        %1167 = vperm.xlu0 %1166, %v321
        %v1168 = vpop.permute.xlu0 %1167
        %v1170 = vmul.f32 %v1163, %v1168
        %v1171 = vmul.f32 %v1164, %v1168
        %v1172 = vmul.f32 %v1165, %v1168
        %1173 = vset.pattern.permute.xlu0 5
        %1174 = vperm.xlu0 %1173, %v321
        %v1175 = vpop.permute.xlu0 %1174
        %v1177 = vadd.f32 %v1170, %v1175
        %v1178 = vadd.f32 %v1171, %v1175
        %v1179 = vadd.f32 %v1172, %v1175
        %v1180 = vmul.f32 %v1177, 0.5
        %v1181 = vmul.f32 %v1178, 0.5
        %v1182 = vmul.f32 %v1179, 0.5
        %v1183 = vmul.f32 %v1177, 0.70710677
        %v1184 = vmul.f32 %v1178, 0.70710677
        %v1185 = vmul.f32 %v1179, 0.70710677
        %v1186 = verf.f32.pop %v1183
        %v1187 = verf.f32.pop %v1184
        %v1188 = verf.f32.pop %v1185
        %v1189 = vadd.f32 %v1186, 1.0
        %v1190 = vadd.f32 %v1187, 1.0
        %v1191 = vadd.f32 %v1188, 1.0
        %v1192 = vmul.f32 %v1180, %v1189
        %v1193 = vmul.f32 %v1181, %v1190
        %v1194 = vmul.f32 %v1182, %v1191
        %v1195 = vmul.f32 %v1192, %v544
        %v1196 = vmul.f32 %v1193, %v548
        %v1197 = vmul.f32 %v1194, %v552
        %v1198 = vadd.f32 %v766, %v1195
        %v1199 = vadd.f32 %v767, %v1196
        %v1200 = vadd.f32 %v768, %v1197
        %1201 = vst [vmem:[%s317] sm:$0xff] %v1198
        %1202 = vst [vmem:[%s317 + $0x8] sm:$0xff] %v1199
        %1203 = vst.msk [vmem:[%s317 + $0x10] sm:$0xff] %vm560, %v1200
        %s1204 = sand.u32 %s164, 1
        %s1205 = scalar_lea.sflag [#allocation4], %s1204
        %s1206 = sand.u32 %s164, 1
        %s1207 = smul.addr %s1206, 24
        %s1208 = scalar_lea.vmem [#allocation11], %s1207
        // Predicated region
        $region65: #{tpu_custom_call.1} parent=43 // pred_check
          %p1209 = pneg %p174
        $region66: #{tpu_custom_call.1} parent=43 // pred_check_branch
          %1211 = sbr.rel (%p1209) target = $region68
        $region67: #{tpu_custom_call.1} parent=43 // pred_region
          %s1213 = ssub.s32 384, 384
          %1214 = vsyncadd %s1205, %s1213
          %s1215 = smul.addr %s25, 3
          %s1216 = smul.addr %s1215, 128
          %s1217 = scalar_lea.hbm %s6, %s1216
          %s1219 = sshll.u32 %s1208, 4
          %s1220 = int_to_ptr.vmem [resolvable:$true] %s1219
          %1222 = dma.vmem_to_hbm [thread:$0]  %s1220, 384, %s1217, %s1205
        $region68: #{tpu_custom_call.1} parent=43 // pred_fallthru
          _
      $region44: #{tpu_custom_call.1} parent=5 // pred_fallthru
        _
      %p1223 = scmp.le.s32.totalorder 2, %s20
      // Predicated region
      $region69: #{tpu_custom_call.1} parent=5 // pred_check
        %p1224 = pneg %p1223
      $region70: #{tpu_custom_call.1} parent=5 // pred_check_branch
        %1226 = sbr.rel (%p1224) target = $region72
      $region71: #{tpu_custom_call.1} parent=5 // pred_region
        %s1227 = ssub.s32 %s20, 2
        // Predicated region
        $region73: #{tpu_custom_call.1} parent=71 // pred_check
          %p1228 = pneg %p180
        $region74: #{tpu_custom_call.1} parent=71 // pred_check_branch
          %1230 = sbr.rel (%p1228) target = $region76
        $region75: #{tpu_custom_call.1} parent=71 // pred_region
          %s1231 = sand.u32 %s165, 1
          %s1232 = scalar_lea.sflag [#allocation4], %s1231
          %s1233 = sand.u32 %s165, 1
          %s1234 = smul.addr %s1233, 24
          %s1235 = scalar_lea.vmem [#allocation11], %s1234
          %1236 = dma.done %s1232, 384
        $region76: #{tpu_custom_call.1} parent=71 // pred_fallthru
          _
      $region72: #{tpu_custom_call.1} parent=5 // pred_fallthru
        _
    $region6: #{tpu_custom_call.1} parent=1 // loop_footer
      %s24 = sadd.s32 1, %s20
    $region7: #{tpu_custom_call.1} parent=1 // loop_footer_branch
      %19 = sbr.rel target = $region3
    $region8: #{tpu_custom_call.1} parent=1 // loop_exit
      _
    %1237 = vsyncpa [#allocation3], 1
    %s1238 = scalar_lea.sflag [#allocation3], 1
    %1239 = vsyncpa %s1238, 1
    %1240 = vsyncpa [#allocation6], 1
    %1241 = vsyncpa [#allocation9], 1
    %1242 = vsyncpa [#allocation4], 1
    %s1243 = scalar_lea.sflag [#allocation4], 1
    %1244 = vsyncpa %s1243, 1

</llo_original>
